<compile_context>
chip_gen: v5e
topology: v5e:2x2
jax: 0.10.0
libtpu: 0.0.40
codegen_flags: <defaults>
</compile_context>

<pallas_src>
import functools

import jax
import jax.numpy as jnp
from jax.experimental import pallas as pl
from jax.experimental.pallas import tpu as pltpu


def _round_up(x, m):
    return (x + m - 1) // m * m


def _encoder_lstm_kernel(x_ref, w_ih0_ref, w_ihr_ref, w_hh_ref, b_ref,
                         h_out_ref, c_out_ref, xp_sc, act_sc,
                         *, n_layers, seq_len, b_pad, hidden, gate_stride,
                         unroll):
    """All LSTM layers + the full time recurrence in one kernel invocation.

    x_ref:     (T*B_pad, E)          embedded tokens (layer-0 input), f32
    w_ih0_ref: (E, N)                layer-0 input projection (gate-packed cols)
    w_ihr_ref: (max(L-1,1), H, N)    input projections for layers >= 1
    w_hh_ref:  (L, H, N)             recurrent projections
    b_ref:     (L, 1, N)             fused bias b_ih + b_hh (f32)
    h_out_ref: (L, B_pad, H)         final hidden state per layer
    c_out_ref: (L, B_pad, H)         final cell state per layer
    xp_sc:     (T*B_pad, N)          hoisted input projections (per layer)
    act_sc:    (T*B_pad, H)          inter-layer activations (h_t of layer l)
    """
    H = hidden
    Hs = gate_stride  # column stride between gates (H if packed, 128-mult else)

    for layer in range(n_layers):                       # static layer loop
        if layer == 0:
            x2d = x_ref[...]                            # (T*B_pad, E)
            w_ih = w_ih0_ref[...]                       # (E, N)
        else:
            x2d = act_sc[...]                           # (T*B_pad, H), fully written
            w_ih = w_ihr_ref[layer - 1]                 # (H, N)
        w_hh = w_hh_ref[layer]                          # (H, N)
        bias = b_ref[layer]                             # (1, N) -> broadcasts

        # Input projection for ALL timesteps in one well-shaped MXU matmul,
        # with the fused bias added once, off the serial critical path.
        xp_sc[...] = (
            jnp.dot(x2d.astype(w_ih.dtype), w_ih,
                    preferred_element_type=jnp.float32) + bias)

        write_seq = layer < n_layers - 1                # last layer feeds nobody

        def step(t, carry, _w_hh=w_hh, _write_seq=write_seq):
            h, c = carry                                # (B_pad, H) f32 each
            row = pl.multiple_of(t * b_pad, b_pad)
            gates = (xp_sc[pl.ds(row, b_pad), :]
                     + jnp.dot(h.astype(_w_hh.dtype), _w_hh,
                               preferred_element_type=jnp.float32))
            i_g = jax.nn.sigmoid(gates[:, 0 * Hs:0 * Hs + H])
            f_g = jax.nn.sigmoid(gates[:, 1 * Hs:1 * Hs + H])
            g_g = jnp.tanh(gates[:, 2 * Hs:2 * Hs + H])
            o_g = jax.nn.sigmoid(gates[:, 3 * Hs:3 * Hs + H])
            c_new = f_g * c + i_g * g_g
            h_new = o_g * jnp.tanh(c_new)
            if _write_seq:
                act_sc[pl.ds(row, b_pad), :] = h_new    # feeds the next layer
            return h_new, c_new

        h0 = jnp.zeros((b_pad, H), jnp.float32)
        c0 = jnp.zeros((b_pad, H), jnp.float32)
        h_T, c_T = jax.lax.fori_loop(0, seq_len, step, (h0, c0), unroll=unroll)
        h_out_ref[layer] = h_T
        c_out_ref[layer] = c_T


def _place_gate_cols(w_t, H, gate_stride, n_cols):
    """(rows, 4H) -> (rows, n_cols): gate g's H columns go to
    [g*gate_stride, g*gate_stride + H); zeros elsewhere."""
    rows = w_t.shape[0]
    if gate_stride == H and n_cols == 4 * H:
        return w_t.astype(jnp.float32)                  # already contiguous
    out = jnp.zeros((rows, n_cols), jnp.float32)
    for g in range(4):
        out = out.at[:, g * gate_stride:g * gate_stride + H].set(
            w_t[:, g * H:(g + 1) * H])
    return out


def encoder_lstm_pallas(embedded, lstm_layers, *, use_bf16=False):
    """embedded: (T, B, E) f32; lstm_layers: list of {w_ih, w_hh, b_ih, b_hh}.

    Returns (hidden, cell), each (n_layers, B, H): the PyTorch LSTM final states.
    """
    T, B, E = embedded.shape
    n_layers = len(lstm_layers)
    H = lstm_layers[0]["w_hh"].shape[1]

    B_pad = _round_up(B, 8)                 # f32 sublane tile
    # Gate column layout: pack the 4 gates contiguously when they fit in (or
    # tile exactly to) 128-lane blocks; otherwise give each gate its own
    # 128-aligned block so gate slices never straddle lane blocks awkwardly.
    if 4 * H <= 128 or H % 128 == 0:
        gate_stride = H
    else:
        gate_stride = _round_up(H, 128)
    N = _round_up(4 * gate_stride, 128)     # matmul output width (gate cols)

    w_dtype = jnp.bfloat16 if use_bf16 else jnp.float32

    w_ih0 = None
    w_ihr_list, w_hh_list, b_list = [], [], []
    for l, p in enumerate(lstm_layers):
        w_ih_t = jnp.asarray(p["w_ih"], jnp.float32).T          # (in_dim, 4H)
        w_hh_t = jnp.asarray(p["w_hh"], jnp.float32).T          # (H, 4H)
        b = (jnp.asarray(p["b_ih"], jnp.float32)
             + jnp.asarray(p["b_hh"], jnp.float32)).reshape(1, 4 * H)
        w_ih_p = _place_gate_cols(w_ih_t, H, gate_stride, N).astype(w_dtype)
        w_hh_p = _place_gate_cols(w_hh_t, H, gate_stride, N).astype(w_dtype)
        b_p = _place_gate_cols(b, H, gate_stride, N)             # bias stays f32
        if l == 0:
            w_ih0 = w_ih_p
        else:
            w_ihr_list.append(w_ih_p)
        w_hh_list.append(w_hh_p)
        b_list.append(b_p)
    w_ihr = (jnp.stack(w_ihr_list) if w_ihr_list
             else jnp.zeros((1, H, N), w_dtype))                 # dummy if L == 1
    w_hh_stack = jnp.stack(w_hh_list)                            # (L, H, N)
    b_stack = jnp.stack(b_list)                                  # (L, 1, N)

    # Pad ONLY the batch to the 8-row sublane tile; no lane padding in HBM.
    # Flatten (T, B_pad) on the host so the kernel needs zero reshapes.
    x = (jnp.zeros((T, B_pad, E), jnp.float32)
         .at[:, :B, :].set(embedded.astype(jnp.float32))
         .reshape(T * B_pad, E))

    kernel = functools.partial(
        _encoder_lstm_kernel, n_layers=n_layers, seq_len=T, b_pad=B_pad,
        hidden=H, gate_stride=gate_stride,
        unroll=(T if T <= 8 else 8))        # partial unroll for longer T

    h_out, c_out = pl.pallas_call(
        kernel,
        out_shape=(
            jax.ShapeDtypeStruct((n_layers, B_pad, H), jnp.float32),
            jax.ShapeDtypeStruct((n_layers, B_pad, H), jnp.float32),
        ),
        grid_spec=pltpu.PrefetchScalarGridSpec(
            num_scalar_prefetch=0,
            grid=(1,),                                  # whole problem, one step
            in_specs=[
                pl.BlockSpec((T * B_pad, E), lambda i: (0, 0)),
                pl.BlockSpec((E, N), lambda i: (0, 0)),
                pl.BlockSpec(w_ihr.shape, lambda i: (0, 0, 0)),
                pl.BlockSpec((n_layers, H, N), lambda i: (0, 0, 0)),
                pl.BlockSpec((n_layers, 1, N), lambda i: (0, 0, 0)),
            ],
            out_specs=[
                pl.BlockSpec((n_layers, B_pad, H), lambda i: (0, 0, 0)),
                pl.BlockSpec((n_layers, B_pad, H), lambda i: (0, 0, 0)),
            ],
            scratch_shapes=[
                pltpu.VMEM((T * B_pad, N), jnp.float32),  # hoisted input proj
                pltpu.VMEM((T * B_pad, H), jnp.float32),  # inter-layer h_t slab
            ],
        ),
        compiler_params=pltpu.CompilerParams(
            dimension_semantics=("arbitrary",),
            vmem_limit_bytes=48 * 1024 * 1024),           # headroom on v7x 64 MiB
    )(x, w_ih0, w_ihr, w_hh_stack, b_stack)

    return h_out[:, :B, :], c_out[:, :B, :]


def init_encoder_params(key, input_dim, embedding_dim, enc_hidden_dim, n_layers):
    """Deterministic parameter init mirroring the PyTorch module's shapes."""
    keys = jax.random.split(key, 1 + 4 * n_layers)
    params = {}
    params["embedding"] = jax.random.normal(
        keys[0], (input_dim, embedding_dim), jnp.float32) * 0.1
    bound = 1.0 / jnp.sqrt(enc_hidden_dim)
    layers = []
    for l in range(n_layers):
        in_dim = embedding_dim if l == 0 else enc_hidden_dim
        k = keys[1 + 4 * l: 1 + 4 * (l + 1)]
        layers.append({
            "w_ih": jax.random.uniform(k[0], (4 * enc_hidden_dim, in_dim),
                                       jnp.float32, -bound, bound),
            "w_hh": jax.random.uniform(k[1], (4 * enc_hidden_dim, enc_hidden_dim),
                                       jnp.float32, -bound, bound),
            "b_ih": jax.random.uniform(k[2], (4 * enc_hidden_dim,),
                                       jnp.float32, -bound, bound),
            "b_hh": jax.random.uniform(k[3], (4 * enc_hidden_dim,),
                                       jnp.float32, -bound, bound),
        })
    params["lstm"] = layers
    return params


@jax.jit
def encoder_forward(params, src):
    """src: (T, B) int32 -> (hidden, cell): each (n_layers, B, H)."""
    embedded = params["embedding"][src]          # (T, B, E) gather (glue)
    # Dropout: eval-mode identity.  TODO(synk): train-mode dropout not implemented.
    return encoder_lstm_pallas(embedded, params["lstm"])


# ---- pure-JAX reference (for correctness check) -----------------------------
def _lstm_layer_ref(x, w_ih, w_hh, b_ih, b_hh):
    T, B, _ = x.shape
    H = w_hh.shape[1]

    def step(carry, x_t):
        h, c = carry
        gates = x_t @ w_ih.T + h @ w_hh.T + b_ih + b_hh
        i = jax.nn.sigmoid(gates[:, 0 * H:1 * H])
        f = jax.nn.sigmoid(gates[:, 1 * H:2 * H])
        g = jnp.tanh(gates[:, 2 * H:3 * H])
        o = jax.nn.sigmoid(gates[:, 3 * H:4 * H])
        c_new = f * c + i * g
        h_new = o * jnp.tanh(c_new)
        return (h_new, c_new), h_new

    init = (jnp.zeros((B, H), jnp.float32), jnp.zeros((B, H), jnp.float32))
    (h_T, c_T), outs = jax.lax.scan(step, init, x)
    return outs, h_T, c_T


def encoder_forward_ref(params, src):
    x = params["embedding"][src]
    hiddens, cells = [], []
    for layer in params["lstm"]:
        x, h_T, c_T = _lstm_layer_ref(x, layer["w_ih"], layer["w_hh"],
                                      layer["b_ih"], layer["b_hh"])
        hiddens.append(h_T)
        cells.append(c_T)
    return jnp.stack(hiddens, axis=0), jnp.stack(cells, axis=0)


if __name__ == "__main__":
    INPUT_DIM = 50        # vocab size
    EMBED_DIM = 32
    HIDDEN_DIM = 32
    N_LAYERS = 2
    SEQ_LEN = 8
    BATCH = 2

    key = jax.random.PRNGKey(0)
    k_params, k_src = jax.random.split(key)
    params = init_encoder_params(k_params, INPUT_DIM, EMBED_DIM, HIDDEN_DIM, N_LAYERS)
    src = jax.random.randint(k_src, (SEQ_LEN, BATCH), 0, INPUT_DIM, dtype=jnp.int32)

    hidden, cell = encoder_forward(params, src)
    hidden, cell = jax.block_until_ready((hidden, cell))

    # sanity: shapes and numerics vs pure-JAX reference
    assert hidden.shape == (N_LAYERS, BATCH, HIDDEN_DIM)
    assert cell.shape == (N_LAYERS, BATCH, HIDDEN_DIM)
    h_ref, c_ref = encoder_forward_ref(params, src)
    assert jnp.allclose(hidden, h_ref, atol=1e-5, rtol=1e-5)
    assert jnp.allclose(cell, c_ref, atol=1e-5, rtol=1e-5)

    print("KERNEL_OK")
</pallas_src>

<mosaic_0001>
module attributes {stable_mosaic.version = 11 : i64} {
  func.func @_encoder_lstm_kernel(%arg0: i32, %arg1: memref<64x32xf32, #tpu.memory_space<vmem>>, %arg2: memref<32x128xf32, #tpu.memory_space<vmem>>, %arg3: memref<1x32x128xf32, #tpu.memory_space<vmem>>, %arg4: memref<2x32x128xf32, #tpu.memory_space<vmem>>, %arg5: memref<2x1x128xf32, #tpu.memory_space<vmem>>, %arg6: memref<2x8x32xf32, #tpu.memory_space<vmem>>, %arg7: memref<2x8x32xf32, #tpu.memory_space<vmem>>, %arg8: memref<64x128xf32, #tpu.memory_space<vmem>>, %arg9: memref<64x32xf32, #tpu.memory_space<vmem>>) attributes {dimension_semantics = [#tpu.dimension_semantics<arbitrary>], iteration_bounds = array<i64: 1>, scalar_prefetch = 0 : i64, scratch_operands = 2 : i64, tpu.core_type = #tpu.core_type<tc>, window_params = [{pipeline_mode = #tpu.pipeline_mode<synchronous>, transform_indices = @transform_0, window_bounds = array<i64: 64, 32>}, {pipeline_mode = #tpu.pipeline_mode<synchronous>, transform_indices = @transform_1, window_bounds = array<i64: 32, 128>}, {pipeline_mode = #tpu.pipeline_mode<synchronous>, transform_indices = @transform_2, window_bounds = array<i64: 1, 32, 128>}, {pipeline_mode = #tpu.pipeline_mode<synchronous>, transform_indices = @transform_3, window_bounds = array<i64: 2, 32, 128>}, {pipeline_mode = #tpu.pipeline_mode<synchronous>, transform_indices = @transform_4, window_bounds = array<i64: 2, 1, 128>}, {pipeline_mode = #tpu.pipeline_mode<synchronous>, transform_indices = @transform_5, window_bounds = array<i64: 2, 8, 32>}, {pipeline_mode = #tpu.pipeline_mode<synchronous>, transform_indices = @transform_6, window_bounds = array<i64: 2, 8, 32>}]} {
    %c0 = arith.constant 0 : index
    %c0_0 = arith.constant 0 : index
    %0 = vector.load %arg1[%c0, %c0_0] : memref<64x32xf32, #tpu.memory_space<vmem>>, vector<64x32xf32>
    %c0_1 = arith.constant 0 : index
    %c0_2 = arith.constant 0 : index
    %1 = vector.load %arg2[%c0_1, %c0_2] : memref<32x128xf32, #tpu.memory_space<vmem>>, vector<32x128xf32>
    %c0_3 = arith.constant 0 : index
    %c0_4 = arith.constant 0 : index
    %c0_5 = arith.constant 0 : index
    %2 = vector.load %arg4[%c0_3, %c0_4, %c0_5] : memref<2x32x128xf32, #tpu.memory_space<vmem>>, vector<1x32x128xf32>
    %3 = vector.shape_cast %2 : vector<1x32x128xf32> to vector<32x128xf32>
    %c0_6 = arith.constant 0 : index
    %c0_7 = arith.constant 0 : index
    %c0_8 = arith.constant 0 : index
    %4 = vector.load %arg5[%c0_6, %c0_7, %c0_8] : memref<2x1x128xf32, #tpu.memory_space<vmem>>, vector<1x1x128xf32>
    %5 = vector.shape_cast %4 : vector<1x1x128xf32> to vector<1x128xf32>
    %cst = arith.constant dense<0.000000e+00> : vector<64x128xf32>
    %6 = tpu.matmul %0, %1, %cst {dimension_numbers = #tpu.dot_dimension_numbers<[1], [0], [0], [1], [0, 0, 1, 1], [], []>} : vector<64x32xf32>, vector<32x128xf32>, vector<64x128xf32> -> vector<64x128xf32>
    %7 = vector.broadcast %5 : vector<1x128xf32> to vector<64x128xf32>
    %8 = arith.addf %6, %7 : vector<64x128xf32>
    %c0_9 = arith.constant 0 : index
    %c0_10 = arith.constant 0 : index
    %9 = vector.load %arg8[%c0_9, %c0_10] : memref<64x128xf32, #tpu.memory_space<vmem>>, vector<64x128xf32>
    tpu.vector_store %arg8[%c0_9, %c0_10], %8 {strides = array<i32>} : memref<64x128xf32, #tpu.memory_space<vmem>>, vector<64x128xf32>,
    %cst_11 = arith.constant 0.000000e+00 : f32
    %10 = vector.broadcast %cst_11 : f32 to vector<8x32xf32>
    %cst_12 = arith.constant 0.000000e+00 : f32
    %11 = vector.broadcast %cst_12 : f32 to vector<8x32xf32>
    %c0_i32 = arith.constant 0 : i32
    %c8_i32 = arith.constant 8 : i32
    %12 = arith.muli %c0_i32, %c8_i32 : i32
    %13 = tpu.assume_multiple %12, 8 : i32
    %14 = arith.index_cast %13 : i32 to index
    %c0_13 = arith.constant 0 : index
    %15 = vector.load %arg8[%14, %c0_13] : memref<64x128xf32, #tpu.memory_space<vmem>>, vector<8x128xf32>
    %cst_14 = arith.constant dense<0.000000e+00> : vector<8x128xf32>
    %16 = tpu.matmul %10, %3, %cst_14 {dimension_numbers = #tpu.dot_dimension_numbers<[1], [0], [0], [1], [0, 0, 1, 1], [], []>} : vector<8x32xf32>, vector<32x128xf32>, vector<8x128xf32> -> vector<8x128xf32>
    %17 = arith.addf %15, %16 : vector<8x128xf32>
    %18 = vector.extract_strided_slice %17 {offsets = [0, 0], sizes = [8, 32], strides = [1, 1]} : vector<8x128xf32> to vector<8x32xf32>
    %19 = arith.negf %18 : vector<8x32xf32>
    %20 = math.exp %19 : vector<8x32xf32>
    %cst_15 = arith.constant 1.000000e+00 : f32
    %21 = vector.broadcast %cst_15 : f32 to vector<8x32xf32>
    %22 = arith.addf %21, %20 : vector<8x32xf32>
    %23 = arith.divf %21, %22 : vector<8x32xf32>
    %24 = vector.extract_strided_slice %17 {offsets = [0, 32], sizes = [8, 32], strides = [1, 1]} : vector<8x128xf32> to vector<8x32xf32>
    %25 = arith.negf %24 : vector<8x32xf32>
    %26 = math.exp %25 : vector<8x32xf32>
    %cst_16 = arith.constant 1.000000e+00 : f32
    %27 = vector.broadcast %cst_16 : f32 to vector<8x32xf32>
    %28 = arith.addf %27, %26 : vector<8x32xf32>
    %29 = arith.divf %27, %28 : vector<8x32xf32>
    %30 = vector.extract_strided_slice %17 {offsets = [0, 64], sizes = [8, 32], strides = [1, 1]} : vector<8x128xf32> to vector<8x32xf32>
    %31 = math.tanh %30 : vector<8x32xf32>
    %32 = vector.extract_strided_slice %17 {offsets = [0, 96], sizes = [8, 32], strides = [1, 1]} : vector<8x128xf32> to vector<8x32xf32>
    %33 = arith.negf %32 : vector<8x32xf32>
    %34 = math.exp %33 : vector<8x32xf32>
    %cst_17 = arith.constant 1.000000e+00 : f32
    %35 = vector.broadcast %cst_17 : f32 to vector<8x32xf32>
    %36 = arith.addf %35, %34 : vector<8x32xf32>
    %37 = arith.divf %35, %36 : vector<8x32xf32>
    %38 = arith.mulf %29, %11 : vector<8x32xf32>
    %39 = arith.mulf %23, %31 : vector<8x32xf32>
    %40 = arith.addf %38, %39 : vector<8x32xf32>
    %41 = math.tanh %40 : vector<8x32xf32>
    %42 = arith.mulf %37, %41 : vector<8x32xf32>
    %43 = arith.index_cast %13 : i32 to index
    %c0_18 = arith.constant 0 : index
    %44 = vector.load %arg9[%43, %c0_18] : memref<64x32xf32, #tpu.memory_space<vmem>>, vector<8x32xf32>
    tpu.vector_store %arg9[%43, %c0_18], %42 {strides = array<i32>} : memref<64x32xf32, #tpu.memory_space<vmem>>, vector<8x32xf32>,
    %c1_i32 = arith.constant 1 : i32
    %c8_i32_19 = arith.constant 8 : i32
    %45 = arith.muli %c1_i32, %c8_i32_19 : i32
    %46 = tpu.assume_multiple %45, 8 : i32
    %47 = arith.index_cast %46 : i32 to index
    %c0_20 = arith.constant 0 : index
    %48 = vector.load %arg8[%47, %c0_20] : memref<64x128xf32, #tpu.memory_space<vmem>>, vector<8x128xf32>
    %cst_21 = arith.constant dense<0.000000e+00> : vector<8x128xf32>
    %49 = tpu.matmul %42, %3, %cst_21 {dimension_numbers = #tpu.dot_dimension_numbers<[1], [0], [0], [1], [0, 0, 1, 1], [], []>} : vector<8x32xf32>, vector<32x128xf32>, vector<8x128xf32> -> vector<8x128xf32>
    %50 = arith.addf %48, %49 : vector<8x128xf32>
    %51 = vector.extract_strided_slice %50 {offsets = [0, 0], sizes = [8, 32], strides = [1, 1]} : vector<8x128xf32> to vector<8x32xf32>
    %52 = arith.negf %51 : vector<8x32xf32>
    %53 = math.exp %52 : vector<8x32xf32>
    %cst_22 = arith.constant 1.000000e+00 : f32
    %54 = vector.broadcast %cst_22 : f32 to vector<8x32xf32>
    %55 = arith.addf %54, %53 : vector<8x32xf32>
    %56 = arith.divf %54, %55 : vector<8x32xf32>
    %57 = vector.extract_strided_slice %50 {offsets = [0, 32], sizes = [8, 32], strides = [1, 1]} : vector<8x128xf32> to vector<8x32xf32>
    %58 = arith.negf %57 : vector<8x32xf32>
    %59 = math.exp %58 : vector<8x32xf32>
    %cst_23 = arith.constant 1.000000e+00 : f32
    %60 = vector.broadcast %cst_23 : f32 to vector<8x32xf32>
    %61 = arith.addf %60, %59 : vector<8x32xf32>
    %62 = arith.divf %60, %61 : vector<8x32xf32>
    %63 = vector.extract_strided_slice %50 {offsets = [0, 64], sizes = [8, 32], strides = [1, 1]} : vector<8x128xf32> to vector<8x32xf32>
    %64 = math.tanh %63 : vector<8x32xf32>
    %65 = vector.extract_strided_slice %50 {offsets = [0, 96], sizes = [8, 32], strides = [1, 1]} : vector<8x128xf32> to vector<8x32xf32>
    %66 = arith.negf %65 : vector<8x32xf32>
    %67 = math.exp %66 : vector<8x32xf32>
    %cst_24 = arith.constant 1.000000e+00 : f32
    %68 = vector.broadcast %cst_24 : f32 to vector<8x32xf32>
    %69 = arith.addf %68, %67 : vector<8x32xf32>
    %70 = arith.divf %68, %69 : vector<8x32xf32>
    %71 = arith.mulf %62, %40 : vector<8x32xf32>
    %72 = arith.mulf %56, %64 : vector<8x32xf32>
    %73 = arith.addf %71, %72 : vector<8x32xf32>
    %74 = math.tanh %73 : vector<8x32xf32>
    %75 = arith.mulf %70, %74 : vector<8x32xf32>
    %76 = arith.index_cast %46 : i32 to index
    %c0_25 = arith.constant 0 : index
    %77 = vector.load %arg9[%76, %c0_25] : memref<64x32xf32, #tpu.memory_space<vmem>>, vector<8x32xf32>
    tpu.vector_store %arg9[%76, %c0_25], %75 {strides = array<i32>} : memref<64x32xf32, #tpu.memory_space<vmem>>, vector<8x32xf32>,
    %c2_i32 = arith.constant 2 : i32
    %c8_i32_26 = arith.constant 8 : i32
    %78 = arith.muli %c2_i32, %c8_i32_26 : i32
    %79 = tpu.assume_multiple %78, 8 : i32
    %80 = arith.index_cast %79 : i32 to index
    %c0_27 = arith.constant 0 : index
    %81 = vector.load %arg8[%80, %c0_27] : memref<64x128xf32, #tpu.memory_space<vmem>>, vector<8x128xf32>
    %cst_28 = arith.constant dense<0.000000e+00> : vector<8x128xf32>
    %82 = tpu.matmul %75, %3, %cst_28 {dimension_numbers = #tpu.dot_dimension_numbers<[1], [0], [0], [1], [0, 0, 1, 1], [], []>} : vector<8x32xf32>, vector<32x128xf32>, vector<8x128xf32> -> vector<8x128xf32>
    %83 = arith.addf %81, %82 : vector<8x128xf32>
    %84 = vector.extract_strided_slice %83 {offsets = [0, 0], sizes = [8, 32], strides = [1, 1]} : vector<8x128xf32> to vector<8x32xf32>
    %85 = arith.negf %84 : vector<8x32xf32>
    %86 = math.exp %85 : vector<8x32xf32>
    %cst_29 = arith.constant 1.000000e+00 : f32
    %87 = vector.broadcast %cst_29 : f32 to vector<8x32xf32>
    %88 = arith.addf %87, %86 : vector<8x32xf32>
    %89 = arith.divf %87, %88 : vector<8x32xf32>
    %90 = vector.extract_strided_slice %83 {offsets = [0, 32], sizes = [8, 32], strides = [1, 1]} : vector<8x128xf32> to vector<8x32xf32>
    %91 = arith.negf %90 : vector<8x32xf32>
    %92 = math.exp %91 : vector<8x32xf32>
    %cst_30 = arith.constant 1.000000e+00 : f32
    %93 = vector.broadcast %cst_30 : f32 to vector<8x32xf32>
    %94 = arith.addf %93, %92 : vector<8x32xf32>
    %95 = arith.divf %93, %94 : vector<8x32xf32>
    %96 = vector.extract_strided_slice %83 {offsets = [0, 64], sizes = [8, 32], strides = [1, 1]} : vector<8x128xf32> to vector<8x32xf32>
    %97 = math.tanh %96 : vector<8x32xf32>
    %98 = vector.extract_strided_slice %83 {offsets = [0, 96], sizes = [8, 32], strides = [1, 1]} : vector<8x128xf32> to vector<8x32xf32>
    %99 = arith.negf %98 : vector<8x32xf32>
    %100 = math.exp %99 : vector<8x32xf32>
    %cst_31 = arith.constant 1.000000e+00 : f32
    %101 = vector.broadcast %cst_31 : f32 to vector<8x32xf32>
    %102 = arith.addf %101, %100 : vector<8x32xf32>
    %103 = arith.divf %101, %102 : vector<8x32xf32>
    %104 = arith.mulf %95, %73 : vector<8x32xf32>
    %105 = arith.mulf %89, %97 : vector<8x32xf32>
    %106 = arith.addf %104, %105 : vector<8x32xf32>
    %107 = math.tanh %106 : vector<8x32xf32>
    %108 = arith.mulf %103, %107 : vector<8x32xf32>
    %109 = arith.index_cast %79 : i32 to index
    %c0_32 = arith.constant 0 : index
    %110 = vector.load %arg9[%109, %c0_32] : memref<64x32xf32, #tpu.memory_space<vmem>>, vector<8x32xf32>
    tpu.vector_store %arg9[%109, %c0_32], %108 {strides = array<i32>} : memref<64x32xf32, #tpu.memory_space<vmem>>, vector<8x32xf32>,
    %c3_i32 = arith.constant 3 : i32
    %c8_i32_33 = arith.constant 8 : i32
    %111 = arith.muli %c3_i32, %c8_i32_33 : i32
    %112 = tpu.assume_multiple %111, 8 : i32
    %113 = arith.index_cast %112 : i32 to index
    %c0_34 = arith.constant 0 : index
    %114 = vector.load %arg8[%113, %c0_34] : memref<64x128xf32, #tpu.memory_space<vmem>>, vector<8x128xf32>
    %cst_35 = arith.constant dense<0.000000e+00> : vector<8x128xf32>
    %115 = tpu.matmul %108, %3, %cst_35 {dimension_numbers = #tpu.dot_dimension_numbers<[1], [0], [0], [1], [0, 0, 1, 1], [], []>} : vector<8x32xf32>, vector<32x128xf32>, vector<8x128xf32> -> vector<8x128xf32>
    %116 = arith.addf %114, %115 : vector<8x128xf32>
    %117 = vector.extract_strided_slice %116 {offsets = [0, 0], sizes = [8, 32], strides = [1, 1]} : vector<8x128xf32> to vector<8x32xf32>
    %118 = arith.negf %117 : vector<8x32xf32>
    %119 = math.exp %118 : vector<8x32xf32>
    %cst_36 = arith.constant 1.000000e+00 : f32
    %120 = vector.broadcast %cst_36 : f32 to vector<8x32xf32>
    %121 = arith.addf %120, %119 : vector<8x32xf32>
    %122 = arith.divf %120, %121 : vector<8x32xf32>
    %123 = vector.extract_strided_slice %116 {offsets = [0, 32], sizes = [8, 32], strides = [1, 1]} : vector<8x128xf32> to vector<8x32xf32>
    %124 = arith.negf %123 : vector<8x32xf32>
    %125 = math.exp %124 : vector<8x32xf32>
    %cst_37 = arith.constant 1.000000e+00 : f32
    %126 = vector.broadcast %cst_37 : f32 to vector<8x32xf32>
    %127 = arith.addf %126, %125 : vector<8x32xf32>
    %128 = arith.divf %126, %127 : vector<8x32xf32>
    %129 = vector.extract_strided_slice %116 {offsets = [0, 64], sizes = [8, 32], strides = [1, 1]} : vector<8x128xf32> to vector<8x32xf32>
    %130 = math.tanh %129 : vector<8x32xf32>
    %131 = vector.extract_strided_slice %116 {offsets = [0, 96], sizes = [8, 32], strides = [1, 1]} : vector<8x128xf32> to vector<8x32xf32>
    %132 = arith.negf %131 : vector<8x32xf32>
    %133 = math.exp %132 : vector<8x32xf32>
    %cst_38 = arith.constant 1.000000e+00 : f32
    %134 = vector.broadcast %cst_38 : f32 to vector<8x32xf32>
    %135 = arith.addf %134, %133 : vector<8x32xf32>
    %136 = arith.divf %134, %135 : vector<8x32xf32>
    %137 = arith.mulf %128, %106 : vector<8x32xf32>
    %138 = arith.mulf %122, %130 : vector<8x32xf32>
    %139 = arith.addf %137, %138 : vector<8x32xf32>
    %140 = math.tanh %139 : vector<8x32xf32>
    %141 = arith.mulf %136, %140 : vector<8x32xf32>
    %142 = arith.index_cast %112 : i32 to index
    %c0_39 = arith.constant 0 : index
    %143 = vector.load %arg9[%142, %c0_39] : memref<64x32xf32, #tpu.memory_space<vmem>>, vector<8x32xf32>
    tpu.vector_store %arg9[%142, %c0_39], %141 {strides = array<i32>} : memref<64x32xf32, #tpu.memory_space<vmem>>, vector<8x32xf32>,
    %c4_i32 = arith.constant 4 : i32
    %c8_i32_40 = arith.constant 8 : i32
    %144 = arith.muli %c4_i32, %c8_i32_40 : i32
    %145 = tpu.assume_multiple %144, 8 : i32
    %146 = arith.index_cast %145 : i32 to index
    %c0_41 = arith.constant 0 : index
    %147 = vector.load %arg8[%146, %c0_41] : memref<64x128xf32, #tpu.memory_space<vmem>>, vector<8x128xf32>
    %cst_42 = arith.constant dense<0.000000e+00> : vector<8x128xf32>
    %148 = tpu.matmul %141, %3, %cst_42 {dimension_numbers = #tpu.dot_dimension_numbers<[1], [0], [0], [1], [0, 0, 1, 1], [], []>} : vector<8x32xf32>, vector<32x128xf32>, vector<8x128xf32> -> vector<8x128xf32>
    %149 = arith.addf %147, %148 : vector<8x128xf32>
    %150 = vector.extract_strided_slice %149 {offsets = [0, 0], sizes = [8, 32], strides = [1, 1]} : vector<8x128xf32> to vector<8x32xf32>
    %151 = arith.negf %150 : vector<8x32xf32>
    %152 = math.exp %151 : vector<8x32xf32>
    %cst_43 = arith.constant 1.000000e+00 : f32
    %153 = vector.broadcast %cst_43 : f32 to vector<8x32xf32>
    %154 = arith.addf %153, %152 : vector<8x32xf32>
    %155 = arith.divf %153, %154 : vector<8x32xf32>
    %156 = vector.extract_strided_slice %149 {offsets = [0, 32], sizes = [8, 32], strides = [1, 1]} : vector<8x128xf32> to vector<8x32xf32>
    %157 = arith.negf %156 : vector<8x32xf32>
    %158 = math.exp %157 : vector<8x32xf32>
    %cst_44 = arith.constant 1.000000e+00 : f32
    %159 = vector.broadcast %cst_44 : f32 to vector<8x32xf32>
    %160 = arith.addf %159, %158 : vector<8x32xf32>
    %161 = arith.divf %159, %160 : vector<8x32xf32>
    %162 = vector.extract_strided_slice %149 {offsets = [0, 64], sizes = [8, 32], strides = [1, 1]} : vector<8x128xf32> to vector<8x32xf32>
    %163 = math.tanh %162 : vector<8x32xf32>
    %164 = vector.extract_strided_slice %149 {offsets = [0, 96], sizes = [8, 32], strides = [1, 1]} : vector<8x128xf32> to vector<8x32xf32>
    %165 = arith.negf %164 : vector<8x32xf32>
    %166 = math.exp %165 : vector<8x32xf32>
    %cst_45 = arith.constant 1.000000e+00 : f32
    %167 = vector.broadcast %cst_45 : f32 to vector<8x32xf32>
    %168 = arith.addf %167, %166 : vector<8x32xf32>
    %169 = arith.divf %167, %168 : vector<8x32xf32>
    %170 = arith.mulf %161, %139 : vector<8x32xf32>
    %171 = arith.mulf %155, %163 : vector<8x32xf32>
    %172 = arith.addf %170, %171 : vector<8x32xf32>
    %173 = math.tanh %172 : vector<8x32xf32>
    %174 = arith.mulf %169, %173 : vector<8x32xf32>
    %175 = arith.index_cast %145 : i32 to index
    %c0_46 = arith.constant 0 : index
    %176 = vector.load %arg9[%175, %c0_46] : memref<64x32xf32, #tpu.memory_space<vmem>>, vector<8x32xf32>
    tpu.vector_store %arg9[%175, %c0_46], %174 {strides = array<i32>} : memref<64x32xf32, #tpu.memory_space<vmem>>, vector<8x32xf32>,
    %c5_i32 = arith.constant 5 : i32
    %c8_i32_47 = arith.constant 8 : i32
    %177 = arith.muli %c5_i32, %c8_i32_47 : i32
    %178 = tpu.assume_multiple %177, 8 : i32
    %179 = arith.index_cast %178 : i32 to index
    %c0_48 = arith.constant 0 : index
    %180 = vector.load %arg8[%179, %c0_48] : memref<64x128xf32, #tpu.memory_space<vmem>>, vector<8x128xf32>
    %cst_49 = arith.constant dense<0.000000e+00> : vector<8x128xf32>
    %181 = tpu.matmul %174, %3, %cst_49 {dimension_numbers = #tpu.dot_dimension_numbers<[1], [0], [0], [1], [0, 0, 1, 1], [], []>} : vector<8x32xf32>, vector<32x128xf32>, vector<8x128xf32> -> vector<8x128xf32>
    %182 = arith.addf %180, %181 : vector<8x128xf32>
    %183 = vector.extract_strided_slice %182 {offsets = [0, 0], sizes = [8, 32], strides = [1, 1]} : vector<8x128xf32> to vector<8x32xf32>
    %184 = arith.negf %183 : vector<8x32xf32>
    %185 = math.exp %184 : vector<8x32xf32>
    %cst_50 = arith.constant 1.000000e+00 : f32
    %186 = vector.broadcast %cst_50 : f32 to vector<8x32xf32>
    %187 = arith.addf %186, %185 : vector<8x32xf32>
    %188 = arith.divf %186, %187 : vector<8x32xf32>
    %189 = vector.extract_strided_slice %182 {offsets = [0, 32], sizes = [8, 32], strides = [1, 1]} : vector<8x128xf32> to vector<8x32xf32>
    %190 = arith.negf %189 : vector<8x32xf32>
    %191 = math.exp %190 : vector<8x32xf32>
    %cst_51 = arith.constant 1.000000e+00 : f32
    %192 = vector.broadcast %cst_51 : f32 to vector<8x32xf32>
    %193 = arith.addf %192, %191 : vector<8x32xf32>
    %194 = arith.divf %192, %193 : vector<8x32xf32>
    %195 = vector.extract_strided_slice %182 {offsets = [0, 64], sizes = [8, 32], strides = [1, 1]} : vector<8x128xf32> to vector<8x32xf32>
    %196 = math.tanh %195 : vector<8x32xf32>
    %197 = vector.extract_strided_slice %182 {offsets = [0, 96], sizes = [8, 32], strides = [1, 1]} : vector<8x128xf32> to vector<8x32xf32>
    %198 = arith.negf %197 : vector<8x32xf32>
    %199 = math.exp %198 : vector<8x32xf32>
    %cst_52 = arith.constant 1.000000e+00 : f32
    %200 = vector.broadcast %cst_52 : f32 to vector<8x32xf32>
    %201 = arith.addf %200, %199 : vector<8x32xf32>
    %202 = arith.divf %200, %201 : vector<8x32xf32>
    %203 = arith.mulf %194, %172 : vector<8x32xf32>
    %204 = arith.mulf %188, %196 : vector<8x32xf32>
    %205 = arith.addf %203, %204 : vector<8x32xf32>
    %206 = math.tanh %205 : vector<8x32xf32>
    %207 = arith.mulf %202, %206 : vector<8x32xf32>
    %208 = arith.index_cast %178 : i32 to index
    %c0_53 = arith.constant 0 : index
    %209 = vector.load %arg9[%208, %c0_53] : memref<64x32xf32, #tpu.memory_space<vmem>>, vector<8x32xf32>
    tpu.vector_store %arg9[%208, %c0_53], %207 {strides = array<i32>} : memref<64x32xf32, #tpu.memory_space<vmem>>, vector<8x32xf32>,
    %c6_i32 = arith.constant 6 : i32
    %c8_i32_54 = arith.constant 8 : i32
    %210 = arith.muli %c6_i32, %c8_i32_54 : i32
    %211 = tpu.assume_multiple %210, 8 : i32
    %212 = arith.index_cast %211 : i32 to index
    %c0_55 = arith.constant 0 : index
    %213 = vector.load %arg8[%212, %c0_55] : memref<64x128xf32, #tpu.memory_space<vmem>>, vector<8x128xf32>
    %cst_56 = arith.constant dense<0.000000e+00> : vector<8x128xf32>
    %214 = tpu.matmul %207, %3, %cst_56 {dimension_numbers = #tpu.dot_dimension_numbers<[1], [0], [0], [1], [0, 0, 1, 1], [], []>} : vector<8x32xf32>, vector<32x128xf32>, vector<8x128xf32> -> vector<8x128xf32>
    %215 = arith.addf %213, %214 : vector<8x128xf32>
    %216 = vector.extract_strided_slice %215 {offsets = [0, 0], sizes = [8, 32], strides = [1, 1]} : vector<8x128xf32> to vector<8x32xf32>
    %217 = arith.negf %216 : vector<8x32xf32>
    %218 = math.exp %217 : vector<8x32xf32>
    %cst_57 = arith.constant 1.000000e+00 : f32
    %219 = vector.broadcast %cst_57 : f32 to vector<8x32xf32>
    %220 = arith.addf %219, %218 : vector<8x32xf32>
    %221 = arith.divf %219, %220 : vector<8x32xf32>
    %222 = vector.extract_strided_slice %215 {offsets = [0, 32], sizes = [8, 32], strides = [1, 1]} : vector<8x128xf32> to vector<8x32xf32>
    %223 = arith.negf %222 : vector<8x32xf32>
    %224 = math.exp %223 : vector<8x32xf32>
    %cst_58 = arith.constant 1.000000e+00 : f32
    %225 = vector.broadcast %cst_58 : f32 to vector<8x32xf32>
    %226 = arith.addf %225, %224 : vector<8x32xf32>
    %227 = arith.divf %225, %226 : vector<8x32xf32>
    %228 = vector.extract_strided_slice %215 {offsets = [0, 64], sizes = [8, 32], strides = [1, 1]} : vector<8x128xf32> to vector<8x32xf32>
    %229 = math.tanh %228 : vector<8x32xf32>
    %230 = vector.extract_strided_slice %215 {offsets = [0, 96], sizes = [8, 32], strides = [1, 1]} : vector<8x128xf32> to vector<8x32xf32>
    %231 = arith.negf %230 : vector<8x32xf32>
    %232 = math.exp %231 : vector<8x32xf32>
    %cst_59 = arith.constant 1.000000e+00 : f32
    %233 = vector.broadcast %cst_59 : f32 to vector<8x32xf32>
    %234 = arith.addf %233, %232 : vector<8x32xf32>
    %235 = arith.divf %233, %234 : vector<8x32xf32>
    %236 = arith.mulf %227, %205 : vector<8x32xf32>
    %237 = arith.mulf %221, %229 : vector<8x32xf32>
    %238 = arith.addf %236, %237 : vector<8x32xf32>
    %239 = math.tanh %238 : vector<8x32xf32>
    %240 = arith.mulf %235, %239 : vector<8x32xf32>
    %241 = arith.index_cast %211 : i32 to index
    %c0_60 = arith.constant 0 : index
    %242 = vector.load %arg9[%241, %c0_60] : memref<64x32xf32, #tpu.memory_space<vmem>>, vector<8x32xf32>
    tpu.vector_store %arg9[%241, %c0_60], %240 {strides = array<i32>} : memref<64x32xf32, #tpu.memory_space<vmem>>, vector<8x32xf32>,
    %c7_i32 = arith.constant 7 : i32
    %c8_i32_61 = arith.constant 8 : i32
    %243 = arith.muli %c7_i32, %c8_i32_61 : i32
    %244 = tpu.assume_multiple %243, 8 : i32
    %245 = arith.index_cast %244 : i32 to index
    %c0_62 = arith.constant 0 : index
    %246 = vector.load %arg8[%245, %c0_62] : memref<64x128xf32, #tpu.memory_space<vmem>>, vector<8x128xf32>
    %cst_63 = arith.constant dense<0.000000e+00> : vector<8x128xf32>
    %247 = tpu.matmul %240, %3, %cst_63 {dimension_numbers = #tpu.dot_dimension_numbers<[1], [0], [0], [1], [0, 0, 1, 1], [], []>} : vector<8x32xf32>, vector<32x128xf32>, vector<8x128xf32> -> vector<8x128xf32>
    %248 = arith.addf %246, %247 : vector<8x128xf32>
    %249 = vector.extract_strided_slice %248 {offsets = [0, 0], sizes = [8, 32], strides = [1, 1]} : vector<8x128xf32> to vector<8x32xf32>
    %250 = arith.negf %249 : vector<8x32xf32>
    %251 = math.exp %250 : vector<8x32xf32>
    %cst_64 = arith.constant 1.000000e+00 : f32
    %252 = vector.broadcast %cst_64 : f32 to vector<8x32xf32>
    %253 = arith.addf %252, %251 : vector<8x32xf32>
    %254 = arith.divf %252, %253 : vector<8x32xf32>
    %255 = vector.extract_strided_slice %248 {offsets = [0, 32], sizes = [8, 32], strides = [1, 1]} : vector<8x128xf32> to vector<8x32xf32>
    %256 = arith.negf %255 : vector<8x32xf32>
    %257 = math.exp %256 : vector<8x32xf32>
    %cst_65 = arith.constant 1.000000e+00 : f32
    %258 = vector.broadcast %cst_65 : f32 to vector<8x32xf32>
    %259 = arith.addf %258, %257 : vector<8x32xf32>
    %260 = arith.divf %258, %259 : vector<8x32xf32>
    %261 = vector.extract_strided_slice %248 {offsets = [0, 64], sizes = [8, 32], strides = [1, 1]} : vector<8x128xf32> to vector<8x32xf32>
    %262 = math.tanh %261 : vector<8x32xf32>
    %263 = vector.extract_strided_slice %248 {offsets = [0, 96], sizes = [8, 32], strides = [1, 1]} : vector<8x128xf32> to vector<8x32xf32>
    %264 = arith.negf %263 : vector<8x32xf32>
    %265 = math.exp %264 : vector<8x32xf32>
    %cst_66 = arith.constant 1.000000e+00 : f32
    %266 = vector.broadcast %cst_66 : f32 to vector<8x32xf32>
    %267 = arith.addf %266, %265 : vector<8x32xf32>
    %268 = arith.divf %266, %267 : vector<8x32xf32>
    %269 = arith.mulf %260, %238 : vector<8x32xf32>
    %270 = arith.mulf %254, %262 : vector<8x32xf32>
    %271 = arith.addf %269, %270 : vector<8x32xf32>
    %272 = math.tanh %271 : vector<8x32xf32>
    %273 = arith.mulf %268, %272 : vector<8x32xf32>
    %274 = arith.index_cast %244 : i32 to index
    %c0_67 = arith.constant 0 : index
    %275 = vector.load %arg9[%274, %c0_67] : memref<64x32xf32, #tpu.memory_space<vmem>>, vector<8x32xf32>
    tpu.vector_store %arg9[%274, %c0_67], %273 {strides = array<i32>} : memref<64x32xf32, #tpu.memory_space<vmem>>, vector<8x32xf32>,
    %c8_i32_68 = arith.constant 8 : i32
    %c0_69 = arith.constant 0 : index
    %c0_70 = arith.constant 0 : index
    %c0_71 = arith.constant 0 : index
    %276 = vector.load %arg6[%c0_69, %c0_70, %c0_71] : memref<2x8x32xf32, #tpu.memory_space<vmem>>, vector<1x8x32xf32>
    %277 = vector.shape_cast %276 : vector<1x8x32xf32> to vector<8x32xf32>
    %278 = vector.shape_cast %273 : vector<8x32xf32> to vector<1x8x32xf32>
    tpu.vector_store %arg6[%c0_69, %c0_70, %c0_71], %278 {strides = array<i32>} : memref<2x8x32xf32, #tpu.memory_space<vmem>>, vector<1x8x32xf32>,
    %c0_72 = arith.constant 0 : index
    %c0_73 = arith.constant 0 : index
    %c0_74 = arith.constant 0 : index
    %279 = vector.load %arg7[%c0_72, %c0_73, %c0_74] : memref<2x8x32xf32, #tpu.memory_space<vmem>>, vector<1x8x32xf32>
    %280 = vector.shape_cast %279 : vector<1x8x32xf32> to vector<8x32xf32>
    %281 = vector.shape_cast %271 : vector<8x32xf32> to vector<1x8x32xf32>
    tpu.vector_store %arg7[%c0_72, %c0_73, %c0_74], %281 {strides = array<i32>} : memref<2x8x32xf32, #tpu.memory_space<vmem>>, vector<1x8x32xf32>,
    %c0_75 = arith.constant 0 : index
    %c0_76 = arith.constant 0 : index
    %282 = vector.load %arg9[%c0_75, %c0_76] : memref<64x32xf32, #tpu.memory_space<vmem>>, vector<64x32xf32>
    %c0_77 = arith.constant 0 : index
    %c0_78 = arith.constant 0 : index
    %c0_79 = arith.constant 0 : index
    %283 = vector.load %arg3[%c0_77, %c0_78, %c0_79] : memref<1x32x128xf32, #tpu.memory_space<vmem>>, vector<1x32x128xf32>
    %284 = vector.shape_cast %283 : vector<1x32x128xf32> to vector<32x128xf32>
    %c1 = arith.constant 1 : index
    %c0_80 = arith.constant 0 : index
    %c0_81 = arith.constant 0 : index
    %285 = vector.load %arg4[%c1, %c0_80, %c0_81] : memref<2x32x128xf32, #tpu.memory_space<vmem>>, vector<1x32x128xf32>
    %286 = vector.shape_cast %285 : vector<1x32x128xf32> to vector<32x128xf32>
    %c1_82 = arith.constant 1 : index
    %c0_83 = arith.constant 0 : index
    %c0_84 = arith.constant 0 : index
    %287 = vector.load %arg5[%c1_82, %c0_83, %c0_84] : memref<2x1x128xf32, #tpu.memory_space<vmem>>, vector<1x1x128xf32>
    %288 = vector.shape_cast %287 : vector<1x1x128xf32> to vector<1x128xf32>
    %cst_85 = arith.constant dense<0.000000e+00> : vector<64x128xf32>
    %289 = tpu.matmul %282, %284, %cst_85 {dimension_numbers = #tpu.dot_dimension_numbers<[1], [0], [0], [1], [0, 0, 1, 1], [], []>} : vector<64x32xf32>, vector<32x128xf32>, vector<64x128xf32> -> vector<64x128xf32>
    %290 = vector.broadcast %288 : vector<1x128xf32> to vector<64x128xf32>
    %291 = arith.addf %289, %290 : vector<64x128xf32>
    %c0_86 = arith.constant 0 : index
    %c0_87 = arith.constant 0 : index
    %292 = vector.load %arg8[%c0_86, %c0_87] : memref<64x128xf32, #tpu.memory_space<vmem>>, vector<64x128xf32>
    tpu.vector_store %arg8[%c0_86, %c0_87], %291 {strides = array<i32>} : memref<64x128xf32, #tpu.memory_space<vmem>>, vector<64x128xf32>,
    %cst_88 = arith.constant 0.000000e+00 : f32
    %293 = vector.broadcast %cst_88 : f32 to vector<8x32xf32>
    %cst_89 = arith.constant 0.000000e+00 : f32
    %294 = vector.broadcast %cst_89 : f32 to vector<8x32xf32>
    %c0_i32_90 = arith.constant 0 : i32
    %c8_i32_91 = arith.constant 8 : i32
    %295 = arith.muli %c0_i32_90, %c8_i32_91 : i32
    %296 = tpu.assume_multiple %295, 8 : i32
    %297 = arith.index_cast %296 : i32 to index
    %c0_92 = arith.constant 0 : index
    %298 = vector.load %arg8[%297, %c0_92] : memref<64x128xf32, #tpu.memory_space<vmem>>, vector<8x128xf32>
    %cst_93 = arith.constant dense<0.000000e+00> : vector<8x128xf32>
    %299 = tpu.matmul %293, %286, %cst_93 {dimension_numbers = #tpu.dot_dimension_numbers<[1], [0], [0], [1], [0, 0, 1, 1], [], []>} : vector<8x32xf32>, vector<32x128xf32>, vector<8x128xf32> -> vector<8x128xf32>
    %300 = arith.addf %298, %299 : vector<8x128xf32>
    %301 = vector.extract_strided_slice %300 {offsets = [0, 0], sizes = [8, 32], strides = [1, 1]} : vector<8x128xf32> to vector<8x32xf32>
    %302 = arith.negf %301 : vector<8x32xf32>
    %303 = math.exp %302 : vector<8x32xf32>
    %cst_94 = arith.constant 1.000000e+00 : f32
    %304 = vector.broadcast %cst_94 : f32 to vector<8x32xf32>
    %305 = arith.addf %304, %303 : vector<8x32xf32>
    %306 = arith.divf %304, %305 : vector<8x32xf32>
    %307 = vector.extract_strided_slice %300 {offsets = [0, 32], sizes = [8, 32], strides = [1, 1]} : vector<8x128xf32> to vector<8x32xf32>
    %308 = arith.negf %307 : vector<8x32xf32>
    %309 = math.exp %308 : vector<8x32xf32>
    %cst_95 = arith.constant 1.000000e+00 : f32
    %310 = vector.broadcast %cst_95 : f32 to vector<8x32xf32>
    %311 = arith.addf %310, %309 : vector<8x32xf32>
    %312 = arith.divf %310, %311 : vector<8x32xf32>
    %313 = vector.extract_strided_slice %300 {offsets = [0, 64], sizes = [8, 32], strides = [1, 1]} : vector<8x128xf32> to vector<8x32xf32>
    %314 = math.tanh %313 : vector<8x32xf32>
    %315 = vector.extract_strided_slice %300 {offsets = [0, 96], sizes = [8, 32], strides = [1, 1]} : vector<8x128xf32> to vector<8x32xf32>
    %316 = arith.negf %315 : vector<8x32xf32>
    %317 = math.exp %316 : vector<8x32xf32>
    %cst_96 = arith.constant 1.000000e+00 : f32
    %318 = vector.broadcast %cst_96 : f32 to vector<8x32xf32>
    %319 = arith.addf %318, %317 : vector<8x32xf32>
    %320 = arith.divf %318, %319 : vector<8x32xf32>
    %321 = arith.mulf %312, %294 : vector<8x32xf32>
    %322 = arith.mulf %306, %314 : vector<8x32xf32>
    %323 = arith.addf %321, %322 : vector<8x32xf32>
    %324 = math.tanh %323 : vector<8x32xf32>
    %325 = arith.mulf %320, %324 : vector<8x32xf32>
    %c1_i32_97 = arith.constant 1 : i32
    %c8_i32_98 = arith.constant 8 : i32
    %326 = arith.muli %c1_i32_97, %c8_i32_98 : i32
    %327 = tpu.assume_multiple %326, 8 : i32
    %328 = arith.index_cast %327 : i32 to index
    %c0_99 = arith.constant 0 : index
    %329 = vector.load %arg8[%328, %c0_99] : memref<64x128xf32, #tpu.memory_space<vmem>>, vector<8x128xf32>
    %cst_100 = arith.constant dense<0.000000e+00> : vector<8x128xf32>
    %330 = tpu.matmul %325, %286, %cst_100 {dimension_numbers = #tpu.dot_dimension_numbers<[1], [0], [0], [1], [0, 0, 1, 1], [], []>} : vector<8x32xf32>, vector<32x128xf32>, vector<8x128xf32> -> vector<8x128xf32>
    %331 = arith.addf %329, %330 : vector<8x128xf32>
    %332 = vector.extract_strided_slice %331 {offsets = [0, 0], sizes = [8, 32], strides = [1, 1]} : vector<8x128xf32> to vector<8x32xf32>
    %333 = arith.negf %332 : vector<8x32xf32>
    %334 = math.exp %333 : vector<8x32xf32>
    %cst_101 = arith.constant 1.000000e+00 : f32
    %335 = vector.broadcast %cst_101 : f32 to vector<8x32xf32>
    %336 = arith.addf %335, %334 : vector<8x32xf32>
    %337 = arith.divf %335, %336 : vector<8x32xf32>
    %338 = vector.extract_strided_slice %331 {offsets = [0, 32], sizes = [8, 32], strides = [1, 1]} : vector<8x128xf32> to vector<8x32xf32>
    %339 = arith.negf %338 : vector<8x32xf32>
    %340 = math.exp %339 : vector<8x32xf32>
    %cst_102 = arith.constant 1.000000e+00 : f32
    %341 = vector.broadcast %cst_102 : f32 to vector<8x32xf32>
    %342 = arith.addf %341, %340 : vector<8x32xf32>
    %343 = arith.divf %341, %342 : vector<8x32xf32>
    %344 = vector.extract_strided_slice %331 {offsets = [0, 64], sizes = [8, 32], strides = [1, 1]} : vector<8x128xf32> to vector<8x32xf32>
    %345 = math.tanh %344 : vector<8x32xf32>
    %346 = vector.extract_strided_slice %331 {offsets = [0, 96], sizes = [8, 32], strides = [1, 1]} : vector<8x128xf32> to vector<8x32xf32>
    %347 = arith.negf %346 : vector<8x32xf32>
    %348 = math.exp %347 : vector<8x32xf32>
    %cst_103 = arith.constant 1.000000e+00 : f32
    %349 = vector.broadcast %cst_103 : f32 to vector<8x32xf32>
    %350 = arith.addf %349, %348 : vector<8x32xf32>
    %351 = arith.divf %349, %350 : vector<8x32xf32>
    %352 = arith.mulf %343, %323 : vector<8x32xf32>
    %353 = arith.mulf %337, %345 : vector<8x32xf32>
    %354 = arith.addf %352, %353 : vector<8x32xf32>
    %355 = math.tanh %354 : vector<8x32xf32>
    %356 = arith.mulf %351, %355 : vector<8x32xf32>
    %c2_i32_104 = arith.constant 2 : i32
    %c8_i32_105 = arith.constant 8 : i32
    %357 = arith.muli %c2_i32_104, %c8_i32_105 : i32
    %358 = tpu.assume_multiple %357, 8 : i32
    %359 = arith.index_cast %358 : i32 to index
    %c0_106 = arith.constant 0 : index
    %360 = vector.load %arg8[%359, %c0_106] : memref<64x128xf32, #tpu.memory_space<vmem>>, vector<8x128xf32>
    %cst_107 = arith.constant dense<0.000000e+00> : vector<8x128xf32>
    %361 = tpu.matmul %356, %286, %cst_107 {dimension_numbers = #tpu.dot_dimension_numbers<[1], [0], [0], [1], [0, 0, 1, 1], [], []>} : vector<8x32xf32>, vector<32x128xf32>, vector<8x128xf32> -> vector<8x128xf32>
    %362 = arith.addf %360, %361 : vector<8x128xf32>
    %363 = vector.extract_strided_slice %362 {offsets = [0, 0], sizes = [8, 32], strides = [1, 1]} : vector<8x128xf32> to vector<8x32xf32>
    %364 = arith.negf %363 : vector<8x32xf32>
    %365 = math.exp %364 : vector<8x32xf32>
    %cst_108 = arith.constant 1.000000e+00 : f32
    %366 = vector.broadcast %cst_108 : f32 to vector<8x32xf32>
    %367 = arith.addf %366, %365 : vector<8x32xf32>
    %368 = arith.divf %366, %367 : vector<8x32xf32>
    %369 = vector.extract_strided_slice %362 {offsets = [0, 32], sizes = [8, 32], strides = [1, 1]} : vector<8x128xf32> to vector<8x32xf32>
    %370 = arith.negf %369 : vector<8x32xf32>
    %371 = math.exp %370 : vector<8x32xf32>
    %cst_109 = arith.constant 1.000000e+00 : f32
    %372 = vector.broadcast %cst_109 : f32 to vector<8x32xf32>
    %373 = arith.addf %372, %371 : vector<8x32xf32>
    %374 = arith.divf %372, %373 : vector<8x32xf32>
    %375 = vector.extract_strided_slice %362 {offsets = [0, 64], sizes = [8, 32], strides = [1, 1]} : vector<8x128xf32> to vector<8x32xf32>
    %376 = math.tanh %375 : vector<8x32xf32>
    %377 = vector.extract_strided_slice %362 {offsets = [0, 96], sizes = [8, 32], strides = [1, 1]} : vector<8x128xf32> to vector<8x32xf32>
    %378 = arith.negf %377 : vector<8x32xf32>
    %379 = math.exp %378 : vector<8x32xf32>
    %cst_110 = arith.constant 1.000000e+00 : f32
    %380 = vector.broadcast %cst_110 : f32 to vector<8x32xf32>
    %381 = arith.addf %380, %379 : vector<8x32xf32>
    %382 = arith.divf %380, %381 : vector<8x32xf32>
    %383 = arith.mulf %374, %354 : vector<8x32xf32>
    %384 = arith.mulf %368, %376 : vector<8x32xf32>
    %385 = arith.addf %383, %384 : vector<8x32xf32>
    %386 = math.tanh %385 : vector<8x32xf32>
    %387 = arith.mulf %382, %386 : vector<8x32xf32>
    %c3_i32_111 = arith.constant 3 : i32
    %c8_i32_112 = arith.constant 8 : i32
    %388 = arith.muli %c3_i32_111, %c8_i32_112 : i32
    %389 = tpu.assume_multiple %388, 8 : i32
    %390 = arith.index_cast %389 : i32 to index
    %c0_113 = arith.constant 0 : index
    %391 = vector.load %arg8[%390, %c0_113] : memref<64x128xf32, #tpu.memory_space<vmem>>, vector<8x128xf32>
    %cst_114 = arith.constant dense<0.000000e+00> : vector<8x128xf32>
    %392 = tpu.matmul %387, %286, %cst_114 {dimension_numbers = #tpu.dot_dimension_numbers<[1], [0], [0], [1], [0, 0, 1, 1], [], []>} : vector<8x32xf32>, vector<32x128xf32>, vector<8x128xf32> -> vector<8x128xf32>
    %393 = arith.addf %391, %392 : vector<8x128xf32>
    %394 = vector.extract_strided_slice %393 {offsets = [0, 0], sizes = [8, 32], strides = [1, 1]} : vector<8x128xf32> to vector<8x32xf32>
    %395 = arith.negf %394 : vector<8x32xf32>
    %396 = math.exp %395 : vector<8x32xf32>
    %cst_115 = arith.constant 1.000000e+00 : f32
    %397 = vector.broadcast %cst_115 : f32 to vector<8x32xf32>
    %398 = arith.addf %397, %396 : vector<8x32xf32>
    %399 = arith.divf %397, %398 : vector<8x32xf32>
    %400 = vector.extract_strided_slice %393 {offsets = [0, 32], sizes = [8, 32], strides = [1, 1]} : vector<8x128xf32> to vector<8x32xf32>
    %401 = arith.negf %400 : vector<8x32xf32>
    %402 = math.exp %401 : vector<8x32xf32>
    %cst_116 = arith.constant 1.000000e+00 : f32
    %403 = vector.broadcast %cst_116 : f32 to vector<8x32xf32>
    %404 = arith.addf %403, %402 : vector<8x32xf32>
    %405 = arith.divf %403, %404 : vector<8x32xf32>
    %406 = vector.extract_strided_slice %393 {offsets = [0, 64], sizes = [8, 32], strides = [1, 1]} : vector<8x128xf32> to vector<8x32xf32>
    %407 = math.tanh %406 : vector<8x32xf32>
    %408 = vector.extract_strided_slice %393 {offsets = [0, 96], sizes = [8, 32], strides = [1, 1]} : vector<8x128xf32> to vector<8x32xf32>
    %409 = arith.negf %408 : vector<8x32xf32>
    %410 = math.exp %409 : vector<8x32xf32>
    %cst_117 = arith.constant 1.000000e+00 : f32
    %411 = vector.broadcast %cst_117 : f32 to vector<8x32xf32>
    %412 = arith.addf %411, %410 : vector<8x32xf32>
    %413 = arith.divf %411, %412 : vector<8x32xf32>
    %414 = arith.mulf %405, %385 : vector<8x32xf32>
    %415 = arith.mulf %399, %407 : vector<8x32xf32>
    %416 = arith.addf %414, %415 : vector<8x32xf32>
    %417 = math.tanh %416 : vector<8x32xf32>
    %418 = arith.mulf %413, %417 : vector<8x32xf32>
    %c4_i32_118 = arith.constant 4 : i32
    %c8_i32_119 = arith.constant 8 : i32
    %419 = arith.muli %c4_i32_118, %c8_i32_119 : i32
    %420 = tpu.assume_multiple %419, 8 : i32
    %421 = arith.index_cast %420 : i32 to index
    %c0_120 = arith.constant 0 : index
    %422 = vector.load %arg8[%421, %c0_120] : memref<64x128xf32, #tpu.memory_space<vmem>>, vector<8x128xf32>
    %cst_121 = arith.constant dense<0.000000e+00> : vector<8x128xf32>
    %423 = tpu.matmul %418, %286, %cst_121 {dimension_numbers = #tpu.dot_dimension_numbers<[1], [0], [0], [1], [0, 0, 1, 1], [], []>} : vector<8x32xf32>, vector<32x128xf32>, vector<8x128xf32> -> vector<8x128xf32>
    %424 = arith.addf %422, %423 : vector<8x128xf32>
    %425 = vector.extract_strided_slice %424 {offsets = [0, 0], sizes = [8, 32], strides = [1, 1]} : vector<8x128xf32> to vector<8x32xf32>
    %426 = arith.negf %425 : vector<8x32xf32>
    %427 = math.exp %426 : vector<8x32xf32>
    %cst_122 = arith.constant 1.000000e+00 : f32
    %428 = vector.broadcast %cst_122 : f32 to vector<8x32xf32>
    %429 = arith.addf %428, %427 : vector<8x32xf32>
    %430 = arith.divf %428, %429 : vector<8x32xf32>
    %431 = vector.extract_strided_slice %424 {offsets = [0, 32], sizes = [8, 32], strides = [1, 1]} : vector<8x128xf32> to vector<8x32xf32>
    %432 = arith.negf %431 : vector<8x32xf32>
    %433 = math.exp %432 : vector<8x32xf32>
    %cst_123 = arith.constant 1.000000e+00 : f32
    %434 = vector.broadcast %cst_123 : f32 to vector<8x32xf32>
    %435 = arith.addf %434, %433 : vector<8x32xf32>
    %436 = arith.divf %434, %435 : vector<8x32xf32>
    %437 = vector.extract_strided_slice %424 {offsets = [0, 64], sizes = [8, 32], strides = [1, 1]} : vector<8x128xf32> to vector<8x32xf32>
    %438 = math.tanh %437 : vector<8x32xf32>
    %439 = vector.extract_strided_slice %424 {offsets = [0, 96], sizes = [8, 32], strides = [1, 1]} : vector<8x128xf32> to vector<8x32xf32>
    %440 = arith.negf %439 : vector<8x32xf32>
    %441 = math.exp %440 : vector<8x32xf32>
    %cst_124 = arith.constant 1.000000e+00 : f32
    %442 = vector.broadcast %cst_124 : f32 to vector<8x32xf32>
    %443 = arith.addf %442, %441 : vector<8x32xf32>
    %444 = arith.divf %442, %443 : vector<8x32xf32>
    %445 = arith.mulf %436, %416 : vector<8x32xf32>
    %446 = arith.mulf %430, %438 : vector<8x32xf32>
    %447 = arith.addf %445, %446 : vector<8x32xf32>
    %448 = math.tanh %447 : vector<8x32xf32>
    %449 = arith.mulf %444, %448 : vector<8x32xf32>
    %c5_i32_125 = arith.constant 5 : i32
    %c8_i32_126 = arith.constant 8 : i32
    %450 = arith.muli %c5_i32_125, %c8_i32_126 : i32
    %451 = tpu.assume_multiple %450, 8 : i32
    %452 = arith.index_cast %451 : i32 to index
    %c0_127 = arith.constant 0 : index
    %453 = vector.load %arg8[%452, %c0_127] : memref<64x128xf32, #tpu.memory_space<vmem>>, vector<8x128xf32>
    %cst_128 = arith.constant dense<0.000000e+00> : vector<8x128xf32>
    %454 = tpu.matmul %449, %286, %cst_128 {dimension_numbers = #tpu.dot_dimension_numbers<[1], [0], [0], [1], [0, 0, 1, 1], [], []>} : vector<8x32xf32>, vector<32x128xf32>, vector<8x128xf32> -> vector<8x128xf32>
    %455 = arith.addf %453, %454 : vector<8x128xf32>
    %456 = vector.extract_strided_slice %455 {offsets = [0, 0], sizes = [8, 32], strides = [1, 1]} : vector<8x128xf32> to vector<8x32xf32>
    %457 = arith.negf %456 : vector<8x32xf32>
    %458 = math.exp %457 : vector<8x32xf32>
    %cst_129 = arith.constant 1.000000e+00 : f32
    %459 = vector.broadcast %cst_129 : f32 to vector<8x32xf32>
    %460 = arith.addf %459, %458 : vector<8x32xf32>
    %461 = arith.divf %459, %460 : vector<8x32xf32>
    %462 = vector.extract_strided_slice %455 {offsets = [0, 32], sizes = [8, 32], strides = [1, 1]} : vector<8x128xf32> to vector<8x32xf32>
    %463 = arith.negf %462 : vector<8x32xf32>
    %464 = math.exp %463 : vector<8x32xf32>
    %cst_130 = arith.constant 1.000000e+00 : f32
    %465 = vector.broadcast %cst_130 : f32 to vector<8x32xf32>
    %466 = arith.addf %465, %464 : vector<8x32xf32>
    %467 = arith.divf %465, %466 : vector<8x32xf32>
    %468 = vector.extract_strided_slice %455 {offsets = [0, 64], sizes = [8, 32], strides = [1, 1]} : vector<8x128xf32> to vector<8x32xf32>
    %469 = math.tanh %468 : vector<8x32xf32>
    %470 = vector.extract_strided_slice %455 {offsets = [0, 96], sizes = [8, 32], strides = [1, 1]} : vector<8x128xf32> to vector<8x32xf32>
    %471 = arith.negf %470 : vector<8x32xf32>
    %472 = math.exp %471 : vector<8x32xf32>
    %cst_131 = arith.constant 1.000000e+00 : f32
    %473 = vector.broadcast %cst_131 : f32 to vector<8x32xf32>
    %474 = arith.addf %473, %472 : vector<8x32xf32>
    %475 = arith.divf %473, %474 : vector<8x32xf32>
    %476 = arith.mulf %467, %447 : vector<8x32xf32>
    %477 = arith.mulf %461, %469 : vector<8x32xf32>
    %478 = arith.addf %476, %477 : vector<8x32xf32>
    %479 = math.tanh %478 : vector<8x32xf32>
    %480 = arith.mulf %475, %479 : vector<8x32xf32>
    %c6_i32_132 = arith.constant 6 : i32
    %c8_i32_133 = arith.constant 8 : i32
    %481 = arith.muli %c6_i32_132, %c8_i32_133 : i32
    %482 = tpu.assume_multiple %481, 8 : i32
    %483 = arith.index_cast %482 : i32 to index
    %c0_134 = arith.constant 0 : index
    %484 = vector.load %arg8[%483, %c0_134] : memref<64x128xf32, #tpu.memory_space<vmem>>, vector<8x128xf32>
    %cst_135 = arith.constant dense<0.000000e+00> : vector<8x128xf32>
    %485 = tpu.matmul %480, %286, %cst_135 {dimension_numbers = #tpu.dot_dimension_numbers<[1], [0], [0], [1], [0, 0, 1, 1], [], []>} : vector<8x32xf32>, vector<32x128xf32>, vector<8x128xf32> -> vector<8x128xf32>
    %486 = arith.addf %484, %485 : vector<8x128xf32>
    %487 = vector.extract_strided_slice %486 {offsets = [0, 0], sizes = [8, 32], strides = [1, 1]} : vector<8x128xf32> to vector<8x32xf32>
    %488 = arith.negf %487 : vector<8x32xf32>
    %489 = math.exp %488 : vector<8x32xf32>
    %cst_136 = arith.constant 1.000000e+00 : f32
    %490 = vector.broadcast %cst_136 : f32 to vector<8x32xf32>
    %491 = arith.addf %490, %489 : vector<8x32xf32>
    %492 = arith.divf %490, %491 : vector<8x32xf32>
    %493 = vector.extract_strided_slice %486 {offsets = [0, 32], sizes = [8, 32], strides = [1, 1]} : vector<8x128xf32> to vector<8x32xf32>
    %494 = arith.negf %493 : vector<8x32xf32>
    %495 = math.exp %494 : vector<8x32xf32>
    %cst_137 = arith.constant 1.000000e+00 : f32
    %496 = vector.broadcast %cst_137 : f32 to vector<8x32xf32>
    %497 = arith.addf %496, %495 : vector<8x32xf32>
    %498 = arith.divf %496, %497 : vector<8x32xf32>
    %499 = vector.extract_strided_slice %486 {offsets = [0, 64], sizes = [8, 32], strides = [1, 1]} : vector<8x128xf32> to vector<8x32xf32>
    %500 = math.tanh %499 : vector<8x32xf32>
    %501 = vector.extract_strided_slice %486 {offsets = [0, 96], sizes = [8, 32], strides = [1, 1]} : vector<8x128xf32> to vector<8x32xf32>
    %502 = arith.negf %501 : vector<8x32xf32>
    %503 = math.exp %502 : vector<8x32xf32>
    %cst_138 = arith.constant 1.000000e+00 : f32
    %504 = vector.broadcast %cst_138 : f32 to vector<8x32xf32>
    %505 = arith.addf %504, %503 : vector<8x32xf32>
    %506 = arith.divf %504, %505 : vector<8x32xf32>
    %507 = arith.mulf %498, %478 : vector<8x32xf32>
    %508 = arith.mulf %492, %500 : vector<8x32xf32>
    %509 = arith.addf %507, %508 : vector<8x32xf32>
    %510 = math.tanh %509 : vector<8x32xf32>
    %511 = arith.mulf %506, %510 : vector<8x32xf32>
    %c7_i32_139 = arith.constant 7 : i32
    %c8_i32_140 = arith.constant 8 : i32
    %512 = arith.muli %c7_i32_139, %c8_i32_140 : i32
    %513 = tpu.assume_multiple %512, 8 : i32
    %514 = arith.index_cast %513 : i32 to index
    %c0_141 = arith.constant 0 : index
    %515 = vector.load %arg8[%514, %c0_141] : memref<64x128xf32, #tpu.memory_space<vmem>>, vector<8x128xf32>
    %cst_142 = arith.constant dense<0.000000e+00> : vector<8x128xf32>
    %516 = tpu.matmul %511, %286, %cst_142 {dimension_numbers = #tpu.dot_dimension_numbers<[1], [0], [0], [1], [0, 0, 1, 1], [], []>} : vector<8x32xf32>, vector<32x128xf32>, vector<8x128xf32> -> vector<8x128xf32>
    %517 = arith.addf %515, %516 : vector<8x128xf32>
    %518 = vector.extract_strided_slice %517 {offsets = [0, 0], sizes = [8, 32], strides = [1, 1]} : vector<8x128xf32> to vector<8x32xf32>
    %519 = arith.negf %518 : vector<8x32xf32>
    %520 = math.exp %519 : vector<8x32xf32>
    %cst_143 = arith.constant 1.000000e+00 : f32
    %521 = vector.broadcast %cst_143 : f32 to vector<8x32xf32>
    %522 = arith.addf %521, %520 : vector<8x32xf32>
    %523 = arith.divf %521, %522 : vector<8x32xf32>
    %524 = vector.extract_strided_slice %517 {offsets = [0, 32], sizes = [8, 32], strides = [1, 1]} : vector<8x128xf32> to vector<8x32xf32>
    %525 = arith.negf %524 : vector<8x32xf32>
    %526 = math.exp %525 : vector<8x32xf32>
    %cst_144 = arith.constant 1.000000e+00 : f32
    %527 = vector.broadcast %cst_144 : f32 to vector<8x32xf32>
    %528 = arith.addf %527, %526 : vector<8x32xf32>
    %529 = arith.divf %527, %528 : vector<8x32xf32>
    %530 = vector.extract_strided_slice %517 {offsets = [0, 64], sizes = [8, 32], strides = [1, 1]} : vector<8x128xf32> to vector<8x32xf32>
    %531 = math.tanh %530 : vector<8x32xf32>
    %532 = vector.extract_strided_slice %517 {offsets = [0, 96], sizes = [8, 32], strides = [1, 1]} : vector<8x128xf32> to vector<8x32xf32>
    %533 = arith.negf %532 : vector<8x32xf32>
    %534 = math.exp %533 : vector<8x32xf32>
    %cst_145 = arith.constant 1.000000e+00 : f32
    %535 = vector.broadcast %cst_145 : f32 to vector<8x32xf32>
    %536 = arith.addf %535, %534 : vector<8x32xf32>
    %537 = arith.divf %535, %536 : vector<8x32xf32>
    %538 = arith.mulf %529, %509 : vector<8x32xf32>
    %539 = arith.mulf %523, %531 : vector<8x32xf32>
    %540 = arith.addf %538, %539 : vector<8x32xf32>
    %541 = math.tanh %540 : vector<8x32xf32>
    %542 = arith.mulf %537, %541 : vector<8x32xf32>
    %c8_i32_146 = arith.constant 8 : i32
    %c1_147 = arith.constant 1 : index
    %c0_148 = arith.constant 0 : index
    %c0_149 = arith.constant 0 : index
    %543 = vector.load %arg6[%c1_147, %c0_148, %c0_149] : memref<2x8x32xf32, #tpu.memory_space<vmem>>, vector<1x8x32xf32>
    %544 = vector.shape_cast %543 : vector<1x8x32xf32> to vector<8x32xf32>
    %545 = vector.shape_cast %542 : vector<8x32xf32> to vector<1x8x32xf32>
    tpu.vector_store %arg6[%c1_147, %c0_148, %c0_149], %545 {strides = array<i32>} : memref<2x8x32xf32, #tpu.memory_space<vmem>>, vector<1x8x32xf32>,
    %c1_150 = arith.constant 1 : index
    %c0_151 = arith.constant 0 : index
    %c0_152 = arith.constant 0 : index
    %546 = vector.load %arg7[%c1_150, %c0_151, %c0_152] : memref<2x8x32xf32, #tpu.memory_space<vmem>>, vector<1x8x32xf32>
    %547 = vector.shape_cast %546 : vector<1x8x32xf32> to vector<8x32xf32>
    %548 = vector.shape_cast %540 : vector<8x32xf32> to vector<1x8x32xf32>
    tpu.vector_store %arg7[%c1_150, %c0_151, %c0_152], %548 {strides = array<i32>} : memref<2x8x32xf32, #tpu.memory_space<vmem>>, vector<1x8x32xf32>,
    return
  }
  func.func @transform_0(%arg0: i32) -> (i32, i32) {
    %c0_i32 = arith.constant 0 : i32
    %c0_i32_0 = arith.constant 0 : i32
    %c0_i32_1 = arith.constant 0 : i32
    return %c0_i32, %c0_i32_0 : i32, i32
  }
  func.func @transform_1(%arg0: i32) -> (i32, i32) {
    %c0_i32 = arith.constant 0 : i32
    %c0_i32_0 = arith.constant 0 : i32
    %c0_i32_1 = arith.constant 0 : i32
    return %c0_i32, %c0_i32_0 : i32, i32
  }
  func.func @transform_2(%arg0: i32) -> (i32, i32, i32) {
    %c0_i32 = arith.constant 0 : i32
    %c0_i32_0 = arith.constant 0 : i32
    %c0_i32_1 = arith.constant 0 : i32
    %c0_i32_2 = arith.constant 0 : i32
    return %c0_i32, %c0_i32_0, %c0_i32_1 : i32, i32, i32
  }
  func.func @transform_3(%arg0: i32) -> (i32, i32, i32) {
    %c0_i32 = arith.constant 0 : i32
    %c0_i32_0 = arith.constant 0 : i32
    %c0_i32_1 = arith.constant 0 : i32
    %c0_i32_2 = arith.constant 0 : i32
    return %c0_i32, %c0_i32_0, %c0_i32_1 : i32, i32, i32
  }
  func.func @transform_4(%arg0: i32) -> (i32, i32, i32) {
    %c0_i32 = arith.constant 0 : i32
    %c0_i32_0 = arith.constant 0 : i32
    %c0_i32_1 = arith.constant 0 : i32
    %c0_i32_2 = arith.constant 0 : i32
    return %c0_i32, %c0_i32_0, %c0_i32_1 : i32, i32, i32
  }
  func.func @transform_5(%arg0: i32) -> (i32, i32, i32) {
    %c0_i32 = arith.constant 0 : i32
    %c0_i32_0 = arith.constant 0 : i32
    %c0_i32_1 = arith.constant 0 : i32
    %c0_i32_2 = arith.constant 0 : i32
    return %c0_i32, %c0_i32_0, %c0_i32_1 : i32, i32, i32
  }
  func.func @transform_6(%arg0: i32) -> (i32, i32, i32) {
    %c0_i32 = arith.constant 0 : i32
    %c0_i32_0 = arith.constant 0 : i32
    %c0_i32_1 = arith.constant 0 : i32
    %c0_i32_2 = arith.constant 0 : i32
    return %c0_i32, %c0_i32_0, %c0_i32_1 : i32, i32, i32
  }
}

</mosaic_0001>

<llo_original>
// kernel: encoder_forward.1
$region0: #{encoder_forward.1}
  #allocation0 [shape = 'u32[]', space=smem, size = 0x4, offset = 0x4, fixed_abs, tag = 'smem constant byte address 0x4 - core index']
  #allocation1 [shape = 'u32[72,128]{1,0:T(1,128)}', space=vmem, size = 0x9000, scoped, tag = 'internal scratch']
  #allocation2 [shape = 'f32[64,128]{1,0:T(8,128)}', space=vmem, size = 0x8000, scoped, tag = 'scratch operand']
  #allocation3 [shape = 'f32[64,32]{1,0:T(8,128)}', space=vmem, size = 0x8000, scoped, tag = 'scratch operand']
  %s0 = inlined_call_operand.vmem [shape: f32[64,32], index: 0, kind: input, shape index: {}]
  %s1 = inlined_call_operand.vmem [shape: f32[32,128], index: 1, kind: input, shape index: {}]
  %s2 = inlined_call_operand.vmem [shape: f32[1,32,128], index: 2, kind: input, shape index: {}]
  %s3 = inlined_call_operand.vmem [shape: f32[2,32,128], index: 3, kind: input, shape index: {}]
  %s4 = inlined_call_operand.vmem [shape: f32[2,1,128], index: 4, kind: input, shape index: {}]
  %s5 = inlined_call_operand.vmem [shape: f32[2,8,32], index: 5, kind: output, shape index: {0}]
  %s6 = inlined_call_operand.vmem [shape: f32[2,8,32], index: 6, kind: output, shape index: {1}]
  %7 = xla_tuple %s5, %s6
  %s8 = sld [smem:[#allocation0]]
  $region38: #{encoder_forward.1} parent=0
    _
  %s10 = ssub.s32 1, %s8
  %s11 = scalar_select 0, %s10, %s8
  // Predicated region
  $region2: #{encoder_forward.1} parent=0 // pred_check
    _
  $region3: #{encoder_forward.1} parent=0 // pred_check_branch
    %13 = sbr.rel (0) target = $region5
  $region4: #{encoder_forward.1} parent=0 // pred_region
    _
  $region5: #{encoder_forward.1} parent=0 // pred_fallthru
    _
  // Predicated region
  $region6: #{encoder_forward.1} parent=0 // pred_check
    _
  $region7: #{encoder_forward.1} parent=0 // pred_check_branch
    %15 = sbr.rel (0) target = $region9
  $region8: #{encoder_forward.1} parent=0 // pred_region
    _
  $region9: #{encoder_forward.1} parent=0 // pred_fallthru
    _
  // Predicated region
  $region10: #{encoder_forward.1} parent=0 // pred_check
    _
  $region11: #{encoder_forward.1} parent=0 // pred_check_branch
    %17 = sbr.rel (0) target = $region13
  $region12: #{encoder_forward.1} parent=0 // pred_region
    _
  $region13: #{encoder_forward.1} parent=0 // pred_fallthru
    _
  // Predicated region
  $region14: #{encoder_forward.1} parent=0 // pred_check
    _
  $region15: #{encoder_forward.1} parent=0 // pred_check_branch
    %19 = sbr.rel (0) target = $region17
  $region16: #{encoder_forward.1} parent=0 // pred_region
    _
  $region17: #{encoder_forward.1} parent=0 // pred_fallthru
    _
  // Predicated region
  $region18: #{encoder_forward.1} parent=0 // pred_check
    _
  $region19: #{encoder_forward.1} parent=0 // pred_check_branch
    %21 = sbr.rel (0) target = $region21
  $region20: #{encoder_forward.1} parent=0 // pred_region
    _
  $region21: #{encoder_forward.1} parent=0 // pred_fallthru
    _
  %v22 = vld [vmem:[%s0] sm:$0xff]
  %v23 = vld [vmem:[%s0 + $0x8] sm:$0xff]
  %v24 = vld [vmem:[%s0 + $0x10] sm:$0xff]
  %v25 = vld [vmem:[%s0 + $0x18] sm:$0xff]
  %v26 = vld [vmem:[%s0 + $0x20] sm:$0xff]
  %v27 = vld [vmem:[%s0 + $0x28] sm:$0xff]
  %v28 = vld [vmem:[%s0 + $0x30] sm:$0xff]
  %v29 = vld [vmem:[%s0 + $0x38] sm:$0xff]
  %v30 = vld [vmem:[%s1] sm:$0xff]
  %v31 = vld [vmem:[%s1 + $0x8] sm:$0xff]
  %v32 = vld [vmem:[%s1 + $0x10] sm:$0xff]
  %v33 = vld [vmem:[%s1 + $0x18] sm:$0xff]
  %v34 = vld [vmem:[%s3] sm:$0xff]
  %v35 = vld [vmem:[%s3 + $0x8] sm:$0xff]
  %v36 = vld [vmem:[%s3 + $0x10] sm:$0xff]
  %v37 = vld [vmem:[%s3 + $0x18] sm:$0xff]
  %v38 = vld [vmem:[%s4] sm:$0x1]
  %v40 = vperm.slane %v38, 0
  %vm42 = vcmask 261120
  %v44 = vsel %vm42, %v22, 0
  %v47 = vsel %vm42, %v23, 0
  %v50 = vsel %vm42, %v24, 0
  %v53 = vsel %vm42, %v25, 0
  %v56 = vsel %vm42, %v26, 0
  %v59 = vsel %vm42, %v27, 0
  %v62 = vsel %vm42, %v28, 0
  %v65 = vsel %vm42, %v29, 0
  %67 = vmatpush.msra.mxu0 0.0
  %68 = vmatpush.msra.mxu0 0.0
  %69 = vmatpush.msra.mxu0 0.0
  %70 = vmatpush.msra.mxu0 0.0
  %71 = vmatpush.msra.mxu0 0.0
  %72 = vmatpush.msra.mxu0 0.0
  %73 = vmatpush.msra.mxu0 0.0
  %74 = vmatpush.msra.mxu0 0.0
  %75 = vmatpush.msra.mxu0 0.0
  %76 = vmatpush.msra.mxu0 0.0
  %77 = vmatpush.msra.mxu0 0.0
  %78 = vmatpush.msra.mxu0 0.0
  %79 = vmatpush.msra.mxu0 %v33
  %80 = vmatpush.msra.mxu0 %v32
  %81 = vmatpush.msra.mxu0 %v31
  %82 = vmatpush.msra.mxu0 %v30
  %83 = vmatmul.f32.gmra.mxu0 %v44
  %v84 = vpop.f32.mrf.mxu0
  %v85 = vadd.f32 %v40, %v84
  %86 = vmatmul.f32.gmra.mxu0 %v47
  %v87 = vpop.f32.mrf.mxu0
  %v88 = vadd.f32 %v40, %v87
  %89 = vmatmul.f32.gmra.mxu0 %v50
  %v90 = vpop.f32.mrf.mxu0
  %v91 = vadd.f32 %v40, %v90
  %92 = vmatmul.f32.gmra.mxu0 %v53
  %v93 = vpop.f32.mrf.mxu0
  %v94 = vadd.f32 %v40, %v93
  %95 = vmatmul.f32.gmra.mxu0 %v56
  %v96 = vpop.f32.mrf.mxu0
  %v97 = vadd.f32 %v40, %v96
  %98 = vmatmul.f32.gmra.mxu0 %v59
  %v99 = vpop.f32.mrf.mxu0
  %v100 = vadd.f32 %v40, %v99
  %101 = vmatmul.f32.gmra.mxu0 %v62
  %v102 = vpop.f32.mrf.mxu0
  %v103 = vadd.f32 %v40, %v102
  %104 = vmatmul.f32.gmra.mxu0 %v65
  %v105 = vpop.f32.mrf.mxu0
  %v106 = vadd.f32 %v40, %v105
  %107 = vdwg.mxu0
  %108 = vst [vmem:[#allocation2] sm:$0xff] %v85
  %109 = vst [vmem:[#allocation2 + $0x8] sm:$0xff] %v88
  %110 = vst [vmem:[#allocation2 + $0x10] sm:$0xff] %v91
  %111 = vst [vmem:[#allocation2 + $0x18] sm:$0xff] %v94
  %112 = vst [vmem:[#allocation2 + $0x20] sm:$0xff] %v97
  %113 = vst [vmem:[#allocation2 + $0x28] sm:$0xff] %v100
  %114 = vst [vmem:[#allocation2 + $0x30] sm:$0xff] %v103
  %115 = vst [vmem:[#allocation2 + $0x38] sm:$0xff] %v106
  %v116 = vld [vmem:[#allocation2] sm:$0xff]
  %v118 = vsel %vm42, 0.0, 0
  %120 = vmatpush.msra.mxu0 0.0
  %121 = vmatpush.msra.mxu0 0.0
  %122 = vmatpush.msra.mxu0 0.0
  %123 = vmatpush.msra.mxu0 0.0
  %124 = vmatpush.msra.mxu0 0.0
  %125 = vmatpush.msra.mxu0 0.0
  %126 = vmatpush.msra.mxu0 0.0
  %127 = vmatpush.msra.mxu0 0.0
  %128 = vmatpush.msra.mxu0 0.0
  %129 = vmatpush.msra.mxu0 0.0
  %130 = vmatpush.msra.mxu0 0.0
  %131 = vmatpush.msra.mxu0 0.0
  %132 = vmatpush.msra.mxu0 %v37
  %133 = vmatpush.msra.mxu0 %v36
  %134 = vmatpush.msra.mxu0 %v35
  %135 = vmatpush.msra.mxu0 %v34
  %136 = vmatmul.f32.gmra.mxu0 %v118
  %v137 = vpop.f32.mrf.mxu0
  %v138 = vadd.f32 0.0, %v137
  %139 = vdwg.mxu0
  %v140 = vadd.f32 %v116, %v138
  %v141 = vxor.u32 %v140, 2147483648
  %v142 = vmul.f32 %v141, 1.442695
  %v143 = vpow.pop %v142
  %v144 = vadd.f32 %v143, 1.0
  %v145 = vrcp.pop %v144
  %v146 = vmul.f32 %v144, %v145
  %v147 = vsub.f32 1.0, %v146
  %v148 = vmul.f32 %v145, %v147
  %v149 = vadd.f32 %v145, %v148
  %vm150 = vweird.f32 %v144
  %vm151 = vweird.f32 %v145
  %vm152 = vmor %vm150, %vm151
  %v153 = vsel %vm152, %v145, %v149
  %v154 = vand.u32 2147483647, %v144
  %vm155 = vcmp.eq.f32.partialorder %v154, 8.507059e+37
  %v156 = vand.u32 %v144, 2147483648
  %v157 = vor.u32 1.1754944e-38, %v156
  %v158 = vsel %vm155, %v157, %v153
  %v159 = vmul.f32 1.0, %v158
  %v160 = vtanh.pop %v140
  %v161 = vmul.f32 %v159, 0.0
  %163 = vrot.lane.b32.xlu0 %v160, 64
  %v164 = vpop.permute.xlu0 %163
  %v166 = vmul.f32 %v159, %v164
  %168 = vrot.lane.b32.xlu0 %v166, 32
  %v169 = vpop.permute.xlu0 %168
  %v171 = vadd.f32 %v161, %v169
  %v172 = vtanh.pop %v171
  %174 = vrot.lane.b32.xlu0 %v172, 64
  %v175 = vpop.permute.xlu0 %174
  %v177 = vmul.f32 %v159, %v175
  %179 = vrot.lane.b32.xlu0 %v177, 32
  %v180 = vpop.permute.xlu0 %179
  %182 = vst.msk [vmem:[#allocation3] sm:$0xff] %vm42, %v180
  %s183 = scalar_lea.vmem [#allocation2], 8
  %v184 = vld [vmem:[%s183] sm:$0xff]
  %v185 = vsel %vm42, %v180, 0
  %187 = vmatpush.msra.mxu0 0.0
  %188 = vmatpush.msra.mxu0 0.0
  %189 = vmatpush.msra.mxu0 0.0
  %190 = vmatpush.msra.mxu0 0.0
  %191 = vmatpush.msra.mxu0 0.0
  %192 = vmatpush.msra.mxu0 0.0
  %193 = vmatpush.msra.mxu0 0.0
  %194 = vmatpush.msra.mxu0 0.0
  %195 = vmatpush.msra.mxu0 0.0
  %196 = vmatpush.msra.mxu0 0.0
  %197 = vmatpush.msra.mxu0 0.0
  %198 = vmatpush.msra.mxu0 0.0
  %199 = vmatpush.msra.mxu0 %v37
  %200 = vmatpush.msra.mxu0 %v36
  %201 = vmatpush.msra.mxu0 %v35
  %202 = vmatpush.msra.mxu0 %v34
  %203 = vmatmul.f32.gmra.mxu0 %v185
  %v204 = vpop.f32.mrf.mxu0
  %v205 = vadd.f32 0.0, %v204
  %206 = vdwg.mxu0
  %v207 = vadd.f32 %v184, %v205
  %v208 = vxor.u32 %v207, 2147483648
  %v209 = vmul.f32 %v208, 1.442695
  %v210 = vpow.pop %v209
  %v211 = vadd.f32 %v210, 1.0
  %v212 = vrcp.pop %v211
  %v213 = vmul.f32 %v211, %v212
  %v214 = vsub.f32 1.0, %v213
  %v215 = vmul.f32 %v212, %v214
  %v216 = vadd.f32 %v212, %v215
  %vm217 = vweird.f32 %v211
  %vm218 = vweird.f32 %v212
  %vm219 = vmor %vm217, %vm218
  %v220 = vsel %vm219, %v212, %v216
  %v221 = vand.u32 2147483647, %v211
  %vm222 = vcmp.eq.f32.partialorder %v221, 8.507059e+37
  %v223 = vand.u32 %v211, 2147483648
  %v224 = vor.u32 1.1754944e-38, %v223
  %v225 = vsel %vm222, %v224, %v220
  %v226 = vmul.f32 1.0, %v225
  %v227 = vtanh.pop %v207
  %v228 = vmul.f32 %v226, %v171
  %230 = vrot.lane.b32.xlu0 %v227, 64
  %v231 = vpop.permute.xlu0 %230
  %v233 = vmul.f32 %v226, %v231
  %235 = vrot.lane.b32.xlu0 %v233, 32
  %v236 = vpop.permute.xlu0 %235
  %v238 = vadd.f32 %v228, %v236
  %v239 = vtanh.pop %v238
  %241 = vrot.lane.b32.xlu0 %v239, 64
  %v242 = vpop.permute.xlu0 %241
  %v244 = vmul.f32 %v226, %v242
  %246 = vrot.lane.b32.xlu0 %v244, 32
  %v247 = vpop.permute.xlu0 %246
  %s249 = scalar_lea.vmem [#allocation3], 8
  %250 = vst.msk [vmem:[%s249] sm:$0xff] %vm42, %v247
  %s251 = scalar_lea.vmem [#allocation2], 16
  %v252 = vld [vmem:[%s251] sm:$0xff]
  %v253 = vsel %vm42, %v247, 0
  %255 = vmatpush.msra.mxu0 0.0
  %256 = vmatpush.msra.mxu0 0.0
  %257 = vmatpush.msra.mxu0 0.0
  %258 = vmatpush.msra.mxu0 0.0
  %259 = vmatpush.msra.mxu0 0.0
  %260 = vmatpush.msra.mxu0 0.0
  %261 = vmatpush.msra.mxu0 0.0
  %262 = vmatpush.msra.mxu0 0.0
  %263 = vmatpush.msra.mxu0 0.0
  %264 = vmatpush.msra.mxu0 0.0
  %265 = vmatpush.msra.mxu0 0.0
  %266 = vmatpush.msra.mxu0 0.0
  %267 = vmatpush.msra.mxu0 %v37
  %268 = vmatpush.msra.mxu0 %v36
  %269 = vmatpush.msra.mxu0 %v35
  %270 = vmatpush.msra.mxu0 %v34
  %271 = vmatmul.f32.gmra.mxu0 %v253
  %v272 = vpop.f32.mrf.mxu0
  %v273 = vadd.f32 0.0, %v272
  %274 = vdwg.mxu0
  %v275 = vadd.f32 %v252, %v273
  %v276 = vxor.u32 %v275, 2147483648
  %v277 = vmul.f32 %v276, 1.442695
  %v278 = vpow.pop %v277
  %v279 = vadd.f32 %v278, 1.0
  %v280 = vrcp.pop %v279
  %v281 = vmul.f32 %v279, %v280
  %v282 = vsub.f32 1.0, %v281
  %v283 = vmul.f32 %v280, %v282
  %v284 = vadd.f32 %v280, %v283
  %vm285 = vweird.f32 %v279
  %vm286 = vweird.f32 %v280
  %vm287 = vmor %vm285, %vm286
  %v288 = vsel %vm287, %v280, %v284
  %v289 = vand.u32 2147483647, %v279
  %vm290 = vcmp.eq.f32.partialorder %v289, 8.507059e+37
  %v291 = vand.u32 %v279, 2147483648
  %v292 = vor.u32 1.1754944e-38, %v291
  %v293 = vsel %vm290, %v292, %v288
  %v294 = vmul.f32 1.0, %v293
  %v295 = vtanh.pop %v275
  %v296 = vmul.f32 %v294, %v238
  %298 = vrot.lane.b32.xlu0 %v295, 64
  %v299 = vpop.permute.xlu0 %298
  %v301 = vmul.f32 %v294, %v299
  %303 = vrot.lane.b32.xlu0 %v301, 32
  %v304 = vpop.permute.xlu0 %303
  %v306 = vadd.f32 %v296, %v304
  %v307 = vtanh.pop %v306
  %309 = vrot.lane.b32.xlu0 %v307, 64
  %v310 = vpop.permute.xlu0 %309
  %v312 = vmul.f32 %v294, %v310
  %314 = vrot.lane.b32.xlu0 %v312, 32
  %v315 = vpop.permute.xlu0 %314
  %s317 = scalar_lea.vmem [#allocation3], 16
  %318 = vst.msk [vmem:[%s317] sm:$0xff] %vm42, %v315
  %s319 = scalar_lea.vmem [#allocation2], 24
  %v320 = vld [vmem:[%s319] sm:$0xff]
  %v321 = vsel %vm42, %v315, 0
  %323 = vmatpush.msra.mxu0 0.0
  %324 = vmatpush.msra.mxu0 0.0
  %325 = vmatpush.msra.mxu0 0.0
  %326 = vmatpush.msra.mxu0 0.0
  %327 = vmatpush.msra.mxu0 0.0
  %328 = vmatpush.msra.mxu0 0.0
  %329 = vmatpush.msra.mxu0 0.0
  %330 = vmatpush.msra.mxu0 0.0
  %331 = vmatpush.msra.mxu0 0.0
  %332 = vmatpush.msra.mxu0 0.0
  %333 = vmatpush.msra.mxu0 0.0
  %334 = vmatpush.msra.mxu0 0.0
  %335 = vmatpush.msra.mxu0 %v37
  %336 = vmatpush.msra.mxu0 %v36
  %337 = vmatpush.msra.mxu0 %v35
  %338 = vmatpush.msra.mxu0 %v34
  %339 = vmatmul.f32.gmra.mxu0 %v321
  %v340 = vpop.f32.mrf.mxu0
  %v341 = vadd.f32 0.0, %v340
  %342 = vdwg.mxu0
  %v343 = vadd.f32 %v320, %v341
  %v344 = vxor.u32 %v343, 2147483648
  %v345 = vmul.f32 %v344, 1.442695
  %v346 = vpow.pop %v345
  %v347 = vadd.f32 %v346, 1.0
  %v348 = vrcp.pop %v347
  %v349 = vmul.f32 %v347, %v348
  %v350 = vsub.f32 1.0, %v349
  %v351 = vmul.f32 %v348, %v350
  %v352 = vadd.f32 %v348, %v351
  %vm353 = vweird.f32 %v347
  %vm354 = vweird.f32 %v348
  %vm355 = vmor %vm353, %vm354
  %v356 = vsel %vm355, %v348, %v352
  %v357 = vand.u32 2147483647, %v347
  %vm358 = vcmp.eq.f32.partialorder %v357, 8.507059e+37
  %v359 = vand.u32 %v347, 2147483648
  %v360 = vor.u32 1.1754944e-38, %v359
  %v361 = vsel %vm358, %v360, %v356
  %v362 = vmul.f32 1.0, %v361
  %v363 = vtanh.pop %v343
  %v364 = vmul.f32 %v362, %v306
  %366 = vrot.lane.b32.xlu0 %v363, 64
  %v367 = vpop.permute.xlu0 %366
  %v369 = vmul.f32 %v362, %v367
  %371 = vrot.lane.b32.xlu0 %v369, 32
  %v372 = vpop.permute.xlu0 %371
  %v374 = vadd.f32 %v364, %v372
  %v375 = vtanh.pop %v374
  %377 = vrot.lane.b32.xlu0 %v375, 64
  %v378 = vpop.permute.xlu0 %377
  %v380 = vmul.f32 %v362, %v378
  %382 = vrot.lane.b32.xlu0 %v380, 32
  %v383 = vpop.permute.xlu0 %382
  %s385 = scalar_lea.vmem [#allocation3], 24
  %386 = vst.msk [vmem:[%s385] sm:$0xff] %vm42, %v383
  %s387 = scalar_lea.vmem [#allocation2], 32
  %v388 = vld [vmem:[%s387] sm:$0xff]
  %v389 = vsel %vm42, %v383, 0
  %391 = vmatpush.msra.mxu0 0.0
  %392 = vmatpush.msra.mxu0 0.0
  %393 = vmatpush.msra.mxu0 0.0
  %394 = vmatpush.msra.mxu0 0.0
  %395 = vmatpush.msra.mxu0 0.0
  %396 = vmatpush.msra.mxu0 0.0
  %397 = vmatpush.msra.mxu0 0.0
  %398 = vmatpush.msra.mxu0 0.0
  %399 = vmatpush.msra.mxu0 0.0
  %400 = vmatpush.msra.mxu0 0.0
  %401 = vmatpush.msra.mxu0 0.0
  %402 = vmatpush.msra.mxu0 0.0
  %403 = vmatpush.msra.mxu0 %v37
  %404 = vmatpush.msra.mxu0 %v36
  %405 = vmatpush.msra.mxu0 %v35
  %406 = vmatpush.msra.mxu0 %v34
  %407 = vmatmul.f32.gmra.mxu0 %v389
  %v408 = vpop.f32.mrf.mxu0
  %v409 = vadd.f32 0.0, %v408
  %410 = vdwg.mxu0
  %v411 = vadd.f32 %v388, %v409
  %v412 = vxor.u32 %v411, 2147483648
  %v413 = vmul.f32 %v412, 1.442695
  %v414 = vpow.pop %v413
  %v415 = vadd.f32 %v414, 1.0
  %v416 = vrcp.pop %v415
  %v417 = vmul.f32 %v415, %v416
  %v418 = vsub.f32 1.0, %v417
  %v419 = vmul.f32 %v416, %v418
  %v420 = vadd.f32 %v416, %v419
  %vm421 = vweird.f32 %v415
  %vm422 = vweird.f32 %v416
  %vm423 = vmor %vm421, %vm422
  %v424 = vsel %vm423, %v416, %v420
  %v425 = vand.u32 2147483647, %v415
  %vm426 = vcmp.eq.f32.partialorder %v425, 8.507059e+37
  %v427 = vand.u32 %v415, 2147483648
  %v428 = vor.u32 1.1754944e-38, %v427
  %v429 = vsel %vm426, %v428, %v424
  %v430 = vmul.f32 1.0, %v429
  %v431 = vtanh.pop %v411
  %v432 = vmul.f32 %v430, %v374
  %434 = vrot.lane.b32.xlu0 %v431, 64
  %v435 = vpop.permute.xlu0 %434
  %v437 = vmul.f32 %v430, %v435
  %439 = vrot.lane.b32.xlu0 %v437, 32
  %v440 = vpop.permute.xlu0 %439
  %v442 = vadd.f32 %v432, %v440
  %v443 = vtanh.pop %v442
  %445 = vrot.lane.b32.xlu0 %v443, 64
  %v446 = vpop.permute.xlu0 %445
  %v448 = vmul.f32 %v430, %v446
  %450 = vrot.lane.b32.xlu0 %v448, 32
  %v451 = vpop.permute.xlu0 %450
  %s453 = scalar_lea.vmem [#allocation3], 32
  %454 = vst.msk [vmem:[%s453] sm:$0xff] %vm42, %v451
  %s455 = scalar_lea.vmem [#allocation2], 40
  %v456 = vld [vmem:[%s455] sm:$0xff]
  %v457 = vsel %vm42, %v451, 0
  %459 = vmatpush.msra.mxu0 0.0
  %460 = vmatpush.msra.mxu0 0.0
  %461 = vmatpush.msra.mxu0 0.0
  %462 = vmatpush.msra.mxu0 0.0
  %463 = vmatpush.msra.mxu0 0.0
  %464 = vmatpush.msra.mxu0 0.0
  %465 = vmatpush.msra.mxu0 0.0
  %466 = vmatpush.msra.mxu0 0.0
  %467 = vmatpush.msra.mxu0 0.0
  %468 = vmatpush.msra.mxu0 0.0
  %469 = vmatpush.msra.mxu0 0.0
  %470 = vmatpush.msra.mxu0 0.0
  %471 = vmatpush.msra.mxu0 %v37
  %472 = vmatpush.msra.mxu0 %v36
  %473 = vmatpush.msra.mxu0 %v35
  %474 = vmatpush.msra.mxu0 %v34
  %475 = vmatmul.f32.gmra.mxu0 %v457
  %v476 = vpop.f32.mrf.mxu0
  %v477 = vadd.f32 0.0, %v476
  %478 = vdwg.mxu0
  %v479 = vadd.f32 %v456, %v477
  %v480 = vxor.u32 %v479, 2147483648
  %v481 = vmul.f32 %v480, 1.442695
  %v482 = vpow.pop %v481
  %v483 = vadd.f32 %v482, 1.0
  %v484 = vrcp.pop %v483
  %v485 = vmul.f32 %v483, %v484
  %v486 = vsub.f32 1.0, %v485
  %v487 = vmul.f32 %v484, %v486
  %v488 = vadd.f32 %v484, %v487
  %vm489 = vweird.f32 %v483
  %vm490 = vweird.f32 %v484
  %vm491 = vmor %vm489, %vm490
  %v492 = vsel %vm491, %v484, %v488
  %v493 = vand.u32 2147483647, %v483
  %vm494 = vcmp.eq.f32.partialorder %v493, 8.507059e+37
  %v495 = vand.u32 %v483, 2147483648
  %v496 = vor.u32 1.1754944e-38, %v495
  %v497 = vsel %vm494, %v496, %v492
  %v498 = vmul.f32 1.0, %v497
  %v499 = vtanh.pop %v479
  %v500 = vmul.f32 %v498, %v442
  %502 = vrot.lane.b32.xlu0 %v499, 64
  %v503 = vpop.permute.xlu0 %502
  %v505 = vmul.f32 %v498, %v503
  %507 = vrot.lane.b32.xlu0 %v505, 32
  %v508 = vpop.permute.xlu0 %507
  %v510 = vadd.f32 %v500, %v508
  %v511 = vtanh.pop %v510
  %513 = vrot.lane.b32.xlu0 %v511, 64
  %v514 = vpop.permute.xlu0 %513
  %v516 = vmul.f32 %v498, %v514
  %518 = vrot.lane.b32.xlu0 %v516, 32
  %v519 = vpop.permute.xlu0 %518
  %s521 = scalar_lea.vmem [#allocation3], 40
  %522 = vst.msk [vmem:[%s521] sm:$0xff] %vm42, %v519
  %s523 = scalar_lea.vmem [#allocation2], 48
  %v524 = vld [vmem:[%s523] sm:$0xff]
  %v525 = vsel %vm42, %v519, 0
  %527 = vmatpush.msra.mxu0 0.0
  %528 = vmatpush.msra.mxu0 0.0
  %529 = vmatpush.msra.mxu0 0.0
  %530 = vmatpush.msra.mxu0 0.0
  %531 = vmatpush.msra.mxu0 0.0
  %532 = vmatpush.msra.mxu0 0.0
  %533 = vmatpush.msra.mxu0 0.0
  %534 = vmatpush.msra.mxu0 0.0
  %535 = vmatpush.msra.mxu0 0.0
  %536 = vmatpush.msra.mxu0 0.0
  %537 = vmatpush.msra.mxu0 0.0
  %538 = vmatpush.msra.mxu0 0.0
  %539 = vmatpush.msra.mxu0 %v37
  %540 = vmatpush.msra.mxu0 %v36
  %541 = vmatpush.msra.mxu0 %v35
  %542 = vmatpush.msra.mxu0 %v34
  %543 = vmatmul.f32.gmra.mxu0 %v525
  %v544 = vpop.f32.mrf.mxu0
  %v545 = vadd.f32 0.0, %v544
  %546 = vdwg.mxu0
  %v547 = vadd.f32 %v524, %v545
  %v548 = vxor.u32 %v547, 2147483648
  %v549 = vmul.f32 %v548, 1.442695
  %v550 = vpow.pop %v549
  %v551 = vadd.f32 %v550, 1.0
  %v552 = vrcp.pop %v551
  %v553 = vmul.f32 %v551, %v552
  %v554 = vsub.f32 1.0, %v553
  %v555 = vmul.f32 %v552, %v554
  %v556 = vadd.f32 %v552, %v555
  %vm557 = vweird.f32 %v551
  %vm558 = vweird.f32 %v552
  %vm559 = vmor %vm557, %vm558
  %v560 = vsel %vm559, %v552, %v556
  %v561 = vand.u32 2147483647, %v551
  %vm562 = vcmp.eq.f32.partialorder %v561, 8.507059e+37
  %v563 = vand.u32 %v551, 2147483648
  %v564 = vor.u32 1.1754944e-38, %v563
  %v565 = vsel %vm562, %v564, %v560
  %v566 = vmul.f32 1.0, %v565
  %v567 = vtanh.pop %v547
  %v568 = vmul.f32 %v566, %v510
  %570 = vrot.lane.b32.xlu0 %v567, 64
  %v571 = vpop.permute.xlu0 %570
  %v573 = vmul.f32 %v566, %v571
  %575 = vrot.lane.b32.xlu0 %v573, 32
  %v576 = vpop.permute.xlu0 %575
  %v578 = vadd.f32 %v568, %v576
  %v579 = vtanh.pop %v578
  %581 = vrot.lane.b32.xlu0 %v579, 64
  %v582 = vpop.permute.xlu0 %581
  %v584 = vmul.f32 %v566, %v582
  %586 = vrot.lane.b32.xlu0 %v584, 32
  %v587 = vpop.permute.xlu0 %586
  %s589 = scalar_lea.vmem [#allocation3], 48
  %590 = vst.msk [vmem:[%s589] sm:$0xff] %vm42, %v587
  %s591 = scalar_lea.vmem [#allocation2], 56
  %v592 = vld [vmem:[%s591] sm:$0xff]
  %v593 = vsel %vm42, %v587, 0
  %595 = vmatpush.msra.mxu0 0.0
  %596 = vmatpush.msra.mxu0 0.0
  %597 = vmatpush.msra.mxu0 0.0
  %598 = vmatpush.msra.mxu0 0.0
  %599 = vmatpush.msra.mxu0 0.0
  %600 = vmatpush.msra.mxu0 0.0
  %601 = vmatpush.msra.mxu0 0.0
  %602 = vmatpush.msra.mxu0 0.0
  %603 = vmatpush.msra.mxu0 0.0
  %604 = vmatpush.msra.mxu0 0.0
  %605 = vmatpush.msra.mxu0 0.0
  %606 = vmatpush.msra.mxu0 0.0
  %607 = vmatpush.msra.mxu0 %v37
  %608 = vmatpush.msra.mxu0 %v36
  %609 = vmatpush.msra.mxu0 %v35
  %610 = vmatpush.msra.mxu0 %v34
  %611 = vmatmul.f32.gmra.mxu0 %v593
  %v612 = vpop.f32.mrf.mxu0
  %v613 = vadd.f32 0.0, %v612
  %614 = vdwg.mxu0
  %v615 = vadd.f32 %v592, %v613
  %v616 = vxor.u32 %v615, 2147483648
  %v617 = vmul.f32 %v616, 1.442695
  %v618 = vpow.pop %v617
  %v619 = vadd.f32 %v618, 1.0
  %v620 = vrcp.pop %v619
  %v621 = vmul.f32 %v619, %v620
  %v622 = vsub.f32 1.0, %v621
  %v623 = vmul.f32 %v620, %v622
  %v624 = vadd.f32 %v620, %v623
  %vm625 = vweird.f32 %v619
  %vm626 = vweird.f32 %v620
  %vm627 = vmor %vm625, %vm626
  %v628 = vsel %vm627, %v620, %v624
  %v629 = vand.u32 2147483647, %v619
  %vm630 = vcmp.eq.f32.partialorder %v629, 8.507059e+37
  %v631 = vand.u32 %v619, 2147483648
  %v632 = vor.u32 1.1754944e-38, %v631
  %v633 = vsel %vm630, %v632, %v628
  %v634 = vmul.f32 1.0, %v633
  %v635 = vtanh.pop %v615
  %v636 = vmul.f32 %v634, %v578
  %638 = vrot.lane.b32.xlu0 %v635, 64
  %v639 = vpop.permute.xlu0 %638
  %v641 = vmul.f32 %v634, %v639
  %643 = vrot.lane.b32.xlu0 %v641, 32
  %v644 = vpop.permute.xlu0 %643
  %v646 = vadd.f32 %v636, %v644
  %v647 = vtanh.pop %v646
  %649 = vrot.lane.b32.xlu0 %v647, 64
  %v650 = vpop.permute.xlu0 %649
  %v652 = vmul.f32 %v634, %v650
  %654 = vrot.lane.b32.xlu0 %v652, 32
  %v655 = vpop.permute.xlu0 %654
  %s657 = scalar_lea.vmem [#allocation3], 56
  %658 = vst.msk [vmem:[%s657] sm:$0xff] %vm42, %v655
  %659 = vst.msk [vmem:[%s5] sm:$0xff] %vm42, %v655
  %661 = vrot.lane.b32.xlu0 %v646, 96
  %v662 = vpop.permute.xlu0 %661
  %664 = vst.msk [vmem:[%s6] sm:$0xff] %vm42, %v662
  %v665 = vld [vmem:[#allocation3] sm:$0xff]
  %v666 = vld [vmem:[#allocation3 + $0x8] sm:$0xff]
  %v667 = vld [vmem:[#allocation3 + $0x10] sm:$0xff]
  %v668 = vld [vmem:[#allocation3 + $0x18] sm:$0xff]
  %v669 = vld [vmem:[#allocation3 + $0x20] sm:$0xff]
  %v670 = vld [vmem:[#allocation3 + $0x28] sm:$0xff]
  %v671 = vld [vmem:[#allocation3 + $0x30] sm:$0xff]
  %v672 = vld [vmem:[#allocation3 + $0x38] sm:$0xff]
  %v673 = vld [vmem:[%s2] sm:$0xff]
  %v674 = vld [vmem:[%s2 + $0x8] sm:$0xff]
  %v675 = vld [vmem:[%s2 + $0x10] sm:$0xff]
  %v676 = vld [vmem:[%s2 + $0x18] sm:$0xff]
  %s677 = scalar_lea.vmem %s3, 32
  %v678 = vld [vmem:[%s677] sm:$0xff]
  %v679 = vld [vmem:[%s677 + $0x8] sm:$0xff]
  %v680 = vld [vmem:[%s677 + $0x10] sm:$0xff]
  %v681 = vld [vmem:[%s677 + $0x18] sm:$0xff]
  %s682 = scalar_lea.vmem %s4, 1
  %v683 = vld [vmem:[%s682] sm:$0x1]
  %v685 = vperm.slane %v683, 0
  %v688 = vsel %vm42, %v665, 0
  %v691 = vsel %vm42, %v666, 0
  %v694 = vsel %vm42, %v667, 0
  %v697 = vsel %vm42, %v668, 0
  %v700 = vsel %vm42, %v669, 0
  %v703 = vsel %vm42, %v670, 0
  %v706 = vsel %vm42, %v671, 0
  %v709 = vsel %vm42, %v672, 0
  %711 = vmatpush.msra.mxu0 0.0
  %712 = vmatpush.msra.mxu0 0.0
  %713 = vmatpush.msra.mxu0 0.0
  %714 = vmatpush.msra.mxu0 0.0
  %715 = vmatpush.msra.mxu0 0.0
  %716 = vmatpush.msra.mxu0 0.0
  %717 = vmatpush.msra.mxu0 0.0
  %718 = vmatpush.msra.mxu0 0.0
  %719 = vmatpush.msra.mxu0 0.0
  %720 = vmatpush.msra.mxu0 0.0
  %721 = vmatpush.msra.mxu0 0.0
  %722 = vmatpush.msra.mxu0 0.0
  %723 = vmatpush.msra.mxu0 %v676
  %724 = vmatpush.msra.mxu0 %v675
  %725 = vmatpush.msra.mxu0 %v674
  %726 = vmatpush.msra.mxu0 %v673
  %727 = vmatmul.f32.gmra.mxu0 %v688
  %v728 = vpop.f32.mrf.mxu0
  %v729 = vadd.f32 %v685, %v728
  %730 = vmatmul.f32.gmra.mxu0 %v691
  %v731 = vpop.f32.mrf.mxu0
  %v732 = vadd.f32 %v685, %v731
  %733 = vmatmul.f32.gmra.mxu0 %v694
  %v734 = vpop.f32.mrf.mxu0
  %v735 = vadd.f32 %v685, %v734
  %736 = vmatmul.f32.gmra.mxu0 %v697
  %v737 = vpop.f32.mrf.mxu0
  %v738 = vadd.f32 %v685, %v737
  %739 = vmatmul.f32.gmra.mxu0 %v700
  %v740 = vpop.f32.mrf.mxu0
  %v741 = vadd.f32 %v685, %v740
  %742 = vmatmul.f32.gmra.mxu0 %v703
  %v743 = vpop.f32.mrf.mxu0
  %v744 = vadd.f32 %v685, %v743
  %745 = vmatmul.f32.gmra.mxu0 %v706
  %v746 = vpop.f32.mrf.mxu0
  %v747 = vadd.f32 %v685, %v746
  %748 = vmatmul.f32.gmra.mxu0 %v709
  %v749 = vpop.f32.mrf.mxu0
  %v750 = vadd.f32 %v685, %v749
  %751 = vdwg.mxu0
  %752 = vst [vmem:[#allocation2] sm:$0xff] %v729
  %753 = vst [vmem:[#allocation2 + $0x8] sm:$0xff] %v732
  %754 = vst [vmem:[#allocation2 + $0x10] sm:$0xff] %v735
  %755 = vst [vmem:[#allocation2 + $0x18] sm:$0xff] %v738
  %756 = vst [vmem:[#allocation2 + $0x20] sm:$0xff] %v741
  %757 = vst [vmem:[#allocation2 + $0x28] sm:$0xff] %v744
  %758 = vst [vmem:[#allocation2 + $0x30] sm:$0xff] %v747
  %759 = vst [vmem:[#allocation2 + $0x38] sm:$0xff] %v750
  %v760 = vld [vmem:[#allocation2] sm:$0xff]
  %761 = vmatpush.msra.mxu0 0.0
  %762 = vmatpush.msra.mxu0 0.0
  %763 = vmatpush.msra.mxu0 0.0
  %764 = vmatpush.msra.mxu0 0.0
  %765 = vmatpush.msra.mxu0 0.0
  %766 = vmatpush.msra.mxu0 0.0
  %767 = vmatpush.msra.mxu0 0.0
  %768 = vmatpush.msra.mxu0 0.0
  %769 = vmatpush.msra.mxu0 0.0
  %770 = vmatpush.msra.mxu0 0.0
  %771 = vmatpush.msra.mxu0 0.0
  %772 = vmatpush.msra.mxu0 0.0
  %773 = vmatpush.msra.mxu0 %v681
  %774 = vmatpush.msra.mxu0 %v680
  %775 = vmatpush.msra.mxu0 %v679
  %776 = vmatpush.msra.mxu0 %v678
  %777 = vmatmul.f32.gmra.mxu0 %v118
  %v778 = vpop.f32.mrf.mxu0
  %v779 = vadd.f32 0.0, %v778
  %780 = vdwg.mxu0
  %v781 = vadd.f32 %v760, %v779
  %v782 = vxor.u32 %v781, 2147483648
  %v783 = vmul.f32 %v782, 1.442695
  %v784 = vpow.pop %v783
  %v785 = vadd.f32 %v784, 1.0
  %v786 = vrcp.pop %v785
  %v787 = vmul.f32 %v785, %v786
  %v788 = vsub.f32 1.0, %v787
  %v789 = vmul.f32 %v786, %v788
  %v790 = vadd.f32 %v786, %v789
  %vm791 = vweird.f32 %v785
  %vm792 = vweird.f32 %v786
  %vm793 = vmor %vm791, %vm792
  %v794 = vsel %vm793, %v786, %v790
  %v795 = vand.u32 2147483647, %v785
  %vm796 = vcmp.eq.f32.partialorder %v795, 8.507059e+37
  %v797 = vand.u32 %v785, 2147483648
  %v798 = vor.u32 1.1754944e-38, %v797
  %v799 = vsel %vm796, %v798, %v794
  %v800 = vmul.f32 1.0, %v799
  %v801 = vtanh.pop %v781
  %v802 = vmul.f32 %v800, 0.0
  %804 = vrot.lane.b32.xlu0 %v801, 64
  %v805 = vpop.permute.xlu0 %804
  %v807 = vmul.f32 %v800, %v805
  %809 = vrot.lane.b32.xlu0 %v807, 32
  %v810 = vpop.permute.xlu0 %809
  %v812 = vadd.f32 %v802, %v810
  %v813 = vtanh.pop %v812
  %815 = vrot.lane.b32.xlu0 %v813, 64
  %v816 = vpop.permute.xlu0 %815
  %v818 = vmul.f32 %v800, %v816
  %v819 = vld [vmem:[%s183] sm:$0xff]
  %821 = vrot.lane.b32.xlu0 %v818, 32
  %v822 = vpop.permute.xlu0 %821
  %v823 = vsel %vm42, %v822, 0
  %825 = vmatpush.msra.mxu0 0.0
  %826 = vmatpush.msra.mxu0 0.0
  %827 = vmatpush.msra.mxu0 0.0
  %828 = vmatpush.msra.mxu0 0.0
  %829 = vmatpush.msra.mxu0 0.0
  %830 = vmatpush.msra.mxu0 0.0
  %831 = vmatpush.msra.mxu0 0.0
  %832 = vmatpush.msra.mxu0 0.0
  %833 = vmatpush.msra.mxu0 0.0
  %834 = vmatpush.msra.mxu0 0.0
  %835 = vmatpush.msra.mxu0 0.0
  %836 = vmatpush.msra.mxu0 0.0
  %837 = vmatpush.msra.mxu0 %v681
  %838 = vmatpush.msra.mxu0 %v680
  %839 = vmatpush.msra.mxu0 %v679
  %840 = vmatpush.msra.mxu0 %v678
  %841 = vmatmul.f32.gmra.mxu0 %v823
  %v842 = vpop.f32.mrf.mxu0
  %v843 = vadd.f32 0.0, %v842
  %844 = vdwg.mxu0
  %v845 = vadd.f32 %v819, %v843
  %v846 = vxor.u32 %v845, 2147483648
  %v847 = vmul.f32 %v846, 1.442695
  %v848 = vpow.pop %v847
  %v849 = vadd.f32 %v848, 1.0
  %v850 = vrcp.pop %v849
  %v851 = vmul.f32 %v849, %v850
  %v852 = vsub.f32 1.0, %v851
  %v853 = vmul.f32 %v850, %v852
  %v854 = vadd.f32 %v850, %v853
  %vm855 = vweird.f32 %v849
  %vm856 = vweird.f32 %v850
  %vm857 = vmor %vm855, %vm856
  %v858 = vsel %vm857, %v850, %v854
  %v859 = vand.u32 2147483647, %v849
  %vm860 = vcmp.eq.f32.partialorder %v859, 8.507059e+37
  %v861 = vand.u32 %v849, 2147483648
  %v862 = vor.u32 1.1754944e-38, %v861
  %v863 = vsel %vm860, %v862, %v858
  %v864 = vmul.f32 1.0, %v863
  %v865 = vtanh.pop %v845
  %v866 = vmul.f32 %v864, %v812
  %868 = vrot.lane.b32.xlu0 %v865, 64
  %v869 = vpop.permute.xlu0 %868
  %v871 = vmul.f32 %v864, %v869
  %873 = vrot.lane.b32.xlu0 %v871, 32
  %v874 = vpop.permute.xlu0 %873
  %v876 = vadd.f32 %v866, %v874
  %v877 = vtanh.pop %v876
  %879 = vrot.lane.b32.xlu0 %v877, 64
  %v880 = vpop.permute.xlu0 %879
  %v882 = vmul.f32 %v864, %v880
  %v883 = vld [vmem:[%s251] sm:$0xff]
  %885 = vrot.lane.b32.xlu0 %v882, 32
  %v886 = vpop.permute.xlu0 %885
  %v887 = vsel %vm42, %v886, 0
  %889 = vmatpush.msra.mxu0 0.0
  %890 = vmatpush.msra.mxu0 0.0
  %891 = vmatpush.msra.mxu0 0.0
  %892 = vmatpush.msra.mxu0 0.0
  %893 = vmatpush.msra.mxu0 0.0
  %894 = vmatpush.msra.mxu0 0.0
  %895 = vmatpush.msra.mxu0 0.0
  %896 = vmatpush.msra.mxu0 0.0
  %897 = vmatpush.msra.mxu0 0.0
  %898 = vmatpush.msra.mxu0 0.0
  %899 = vmatpush.msra.mxu0 0.0
  %900 = vmatpush.msra.mxu0 0.0
  %901 = vmatpush.msra.mxu0 %v681
  %902 = vmatpush.msra.mxu0 %v680
  %903 = vmatpush.msra.mxu0 %v679
  %904 = vmatpush.msra.mxu0 %v678
  %905 = vmatmul.f32.gmra.mxu0 %v887
  %v906 = vpop.f32.mrf.mxu0
  %v907 = vadd.f32 0.0, %v906
  %908 = vdwg.mxu0
  %v909 = vadd.f32 %v883, %v907
  %v910 = vxor.u32 %v909, 2147483648
  %v911 = vmul.f32 %v910, 1.442695
  %v912 = vpow.pop %v911
  %v913 = vadd.f32 %v912, 1.0
  %v914 = vrcp.pop %v913
  %v915 = vmul.f32 %v913, %v914
  %v916 = vsub.f32 1.0, %v915
  %v917 = vmul.f32 %v914, %v916
  %v918 = vadd.f32 %v914, %v917
  %vm919 = vweird.f32 %v913
  %vm920 = vweird.f32 %v914
  %vm921 = vmor %vm919, %vm920
  %v922 = vsel %vm921, %v914, %v918
  %v923 = vand.u32 2147483647, %v913
  %vm924 = vcmp.eq.f32.partialorder %v923, 8.507059e+37
  %v925 = vand.u32 %v913, 2147483648
  %v926 = vor.u32 1.1754944e-38, %v925
  %v927 = vsel %vm924, %v926, %v922
  %v928 = vmul.f32 1.0, %v927
  %v929 = vtanh.pop %v909
  %v930 = vmul.f32 %v928, %v876
  %932 = vrot.lane.b32.xlu0 %v929, 64
  %v933 = vpop.permute.xlu0 %932
  %v935 = vmul.f32 %v928, %v933
  %937 = vrot.lane.b32.xlu0 %v935, 32
  %v938 = vpop.permute.xlu0 %937
  %v940 = vadd.f32 %v930, %v938
  %v941 = vtanh.pop %v940
  %943 = vrot.lane.b32.xlu0 %v941, 64
  %v944 = vpop.permute.xlu0 %943
  %v946 = vmul.f32 %v928, %v944
  %v947 = vld [vmem:[%s319] sm:$0xff]
  %949 = vrot.lane.b32.xlu0 %v946, 32
  %v950 = vpop.permute.xlu0 %949
  %v951 = vsel %vm42, %v950, 0
  %953 = vmatpush.msra.mxu0 0.0
  %954 = vmatpush.msra.mxu0 0.0
  %955 = vmatpush.msra.mxu0 0.0
  %956 = vmatpush.msra.mxu0 0.0
  %957 = vmatpush.msra.mxu0 0.0
  %958 = vmatpush.msra.mxu0 0.0
  %959 = vmatpush.msra.mxu0 0.0
  %960 = vmatpush.msra.mxu0 0.0
  %961 = vmatpush.msra.mxu0 0.0
  %962 = vmatpush.msra.mxu0 0.0
  %963 = vmatpush.msra.mxu0 0.0
  %964 = vmatpush.msra.mxu0 0.0
  %965 = vmatpush.msra.mxu0 %v681
  %966 = vmatpush.msra.mxu0 %v680
  %967 = vmatpush.msra.mxu0 %v679
  %968 = vmatpush.msra.mxu0 %v678
  %969 = vmatmul.f32.gmra.mxu0 %v951
  %v970 = vpop.f32.mrf.mxu0
  %v971 = vadd.f32 0.0, %v970
  %972 = vdwg.mxu0
  %v973 = vadd.f32 %v947, %v971
  %v974 = vxor.u32 %v973, 2147483648
  %v975 = vmul.f32 %v974, 1.442695
  %v976 = vpow.pop %v975
  %v977 = vadd.f32 %v976, 1.0
  %v978 = vrcp.pop %v977
  %v979 = vmul.f32 %v977, %v978
  %v980 = vsub.f32 1.0, %v979
  %v981 = vmul.f32 %v978, %v980
  %v982 = vadd.f32 %v978, %v981
  %vm983 = vweird.f32 %v977
  %vm984 = vweird.f32 %v978
  %vm985 = vmor %vm983, %vm984
  %v986 = vsel %vm985, %v978, %v982
  %v987 = vand.u32 2147483647, %v977
  %vm988 = vcmp.eq.f32.partialorder %v987, 8.507059e+37
  %v989 = vand.u32 %v977, 2147483648
  %v990 = vor.u32 1.1754944e-38, %v989
  %v991 = vsel %vm988, %v990, %v986
  %v992 = vmul.f32 1.0, %v991
  %v993 = vtanh.pop %v973
  %v994 = vmul.f32 %v992, %v940
  %996 = vrot.lane.b32.xlu0 %v993, 64
  %v997 = vpop.permute.xlu0 %996
  %v999 = vmul.f32 %v992, %v997
  %1001 = vrot.lane.b32.xlu0 %v999, 32
  %v1002 = vpop.permute.xlu0 %1001
  %v1004 = vadd.f32 %v994, %v1002
  %v1005 = vtanh.pop %v1004
  %1007 = vrot.lane.b32.xlu0 %v1005, 64
  %v1008 = vpop.permute.xlu0 %1007
  %v1010 = vmul.f32 %v992, %v1008
  %v1011 = vld [vmem:[%s387] sm:$0xff]
  %1013 = vrot.lane.b32.xlu0 %v1010, 32
  %v1014 = vpop.permute.xlu0 %1013
  %v1015 = vsel %vm42, %v1014, 0
  %1017 = vmatpush.msra.mxu0 0.0
  %1018 = vmatpush.msra.mxu0 0.0
  %1019 = vmatpush.msra.mxu0 0.0
  %1020 = vmatpush.msra.mxu0 0.0
  %1021 = vmatpush.msra.mxu0 0.0
  %1022 = vmatpush.msra.mxu0 0.0
  %1023 = vmatpush.msra.mxu0 0.0
  %1024 = vmatpush.msra.mxu0 0.0
  %1025 = vmatpush.msra.mxu0 0.0
  %1026 = vmatpush.msra.mxu0 0.0
  %1027 = vmatpush.msra.mxu0 0.0
  %1028 = vmatpush.msra.mxu0 0.0
  %1029 = vmatpush.msra.mxu0 %v681
  %1030 = vmatpush.msra.mxu0 %v680
  %1031 = vmatpush.msra.mxu0 %v679
  %1032 = vmatpush.msra.mxu0 %v678
  %1033 = vmatmul.f32.gmra.mxu0 %v1015
  %v1034 = vpop.f32.mrf.mxu0
  %v1035 = vadd.f32 0.0, %v1034
  %1036 = vdwg.mxu0
  %v1037 = vadd.f32 %v1011, %v1035
  %v1038 = vxor.u32 %v1037, 2147483648
  %v1039 = vmul.f32 %v1038, 1.442695
  %v1040 = vpow.pop %v1039
  %v1041 = vadd.f32 %v1040, 1.0
  %v1042 = vrcp.pop %v1041
  %v1043 = vmul.f32 %v1041, %v1042
  %v1044 = vsub.f32 1.0, %v1043
  %v1045 = vmul.f32 %v1042, %v1044
  %v1046 = vadd.f32 %v1042, %v1045
  %vm1047 = vweird.f32 %v1041
  %vm1048 = vweird.f32 %v1042
  %vm1049 = vmor %vm1047, %vm1048
  %v1050 = vsel %vm1049, %v1042, %v1046
  %v1051 = vand.u32 2147483647, %v1041
  %vm1052 = vcmp.eq.f32.partialorder %v1051, 8.507059e+37
  %v1053 = vand.u32 %v1041, 2147483648
  %v1054 = vor.u32 1.1754944e-38, %v1053
  %v1055 = vsel %vm1052, %v1054, %v1050
  %v1056 = vmul.f32 1.0, %v1055
  %v1057 = vtanh.pop %v1037
  %v1058 = vmul.f32 %v1056, %v1004
  %1060 = vrot.lane.b32.xlu0 %v1057, 64
  %v1061 = vpop.permute.xlu0 %1060
  %v1063 = vmul.f32 %v1056, %v1061
  %1065 = vrot.lane.b32.xlu0 %v1063, 32
  %v1066 = vpop.permute.xlu0 %1065
  %v1068 = vadd.f32 %v1058, %v1066
  %v1069 = vtanh.pop %v1068
  %1071 = vrot.lane.b32.xlu0 %v1069, 64
  %v1072 = vpop.permute.xlu0 %1071
  %v1074 = vmul.f32 %v1056, %v1072
  %v1075 = vld [vmem:[%s455] sm:$0xff]
  %1077 = vrot.lane.b32.xlu0 %v1074, 32
  %v1078 = vpop.permute.xlu0 %1077
  %v1079 = vsel %vm42, %v1078, 0
  %1081 = vmatpush.msra.mxu0 0.0
  %1082 = vmatpush.msra.mxu0 0.0
  %1083 = vmatpush.msra.mxu0 0.0
  %1084 = vmatpush.msra.mxu0 0.0
  %1085 = vmatpush.msra.mxu0 0.0
  %1086 = vmatpush.msra.mxu0 0.0
  %1087 = vmatpush.msra.mxu0 0.0
  %1088 = vmatpush.msra.mxu0 0.0
  %1089 = vmatpush.msra.mxu0 0.0
  %1090 = vmatpush.msra.mxu0 0.0
  %1091 = vmatpush.msra.mxu0 0.0
  %1092 = vmatpush.msra.mxu0 0.0
  %1093 = vmatpush.msra.mxu0 %v681
  %1094 = vmatpush.msra.mxu0 %v680
  %1095 = vmatpush.msra.mxu0 %v679
  %1096 = vmatpush.msra.mxu0 %v678
  %1097 = vmatmul.f32.gmra.mxu0 %v1079
  %v1098 = vpop.f32.mrf.mxu0
  %v1099 = vadd.f32 0.0, %v1098
  %1100 = vdwg.mxu0
  %v1101 = vadd.f32 %v1075, %v1099
  %v1102 = vxor.u32 %v1101, 2147483648
  %v1103 = vmul.f32 %v1102, 1.442695
  %v1104 = vpow.pop %v1103
  %v1105 = vadd.f32 %v1104, 1.0
  %v1106 = vrcp.pop %v1105
  %v1107 = vmul.f32 %v1105, %v1106
  %v1108 = vsub.f32 1.0, %v1107
  %v1109 = vmul.f32 %v1106, %v1108
  %v1110 = vadd.f32 %v1106, %v1109
  %vm1111 = vweird.f32 %v1105
  %vm1112 = vweird.f32 %v1106
  %vm1113 = vmor %vm1111, %vm1112
  %v1114 = vsel %vm1113, %v1106, %v1110
  %v1115 = vand.u32 2147483647, %v1105
  %vm1116 = vcmp.eq.f32.partialorder %v1115, 8.507059e+37
  %v1117 = vand.u32 %v1105, 2147483648
  %v1118 = vor.u32 1.1754944e-38, %v1117
  %v1119 = vsel %vm1116, %v1118, %v1114
  %v1120 = vmul.f32 1.0, %v1119
  %v1121 = vtanh.pop %v1101
  %v1122 = vmul.f32 %v1120, %v1068
  %1124 = vrot.lane.b32.xlu0 %v1121, 64
  %v1125 = vpop.permute.xlu0 %1124
  %v1127 = vmul.f32 %v1120, %v1125
  %1129 = vrot.lane.b32.xlu0 %v1127, 32
  %v1130 = vpop.permute.xlu0 %1129
  %v1132 = vadd.f32 %v1122, %v1130
  %v1133 = vtanh.pop %v1132
  %1135 = vrot.lane.b32.xlu0 %v1133, 64
  %v1136 = vpop.permute.xlu0 %1135
  %v1138 = vmul.f32 %v1120, %v1136
  %v1139 = vld [vmem:[%s523] sm:$0xff]
  %1141 = vrot.lane.b32.xlu0 %v1138, 32
  %v1142 = vpop.permute.xlu0 %1141
  %v1143 = vsel %vm42, %v1142, 0
  %1145 = vmatpush.msra.mxu0 0.0
  %1146 = vmatpush.msra.mxu0 0.0
  %1147 = vmatpush.msra.mxu0 0.0
  %1148 = vmatpush.msra.mxu0 0.0
  %1149 = vmatpush.msra.mxu0 0.0
  %1150 = vmatpush.msra.mxu0 0.0
  %1151 = vmatpush.msra.mxu0 0.0
  %1152 = vmatpush.msra.mxu0 0.0
  %1153 = vmatpush.msra.mxu0 0.0
  %1154 = vmatpush.msra.mxu0 0.0
  %1155 = vmatpush.msra.mxu0 0.0
  %1156 = vmatpush.msra.mxu0 0.0
  %1157 = vmatpush.msra.mxu0 %v681
  %1158 = vmatpush.msra.mxu0 %v680
  %1159 = vmatpush.msra.mxu0 %v679
  %1160 = vmatpush.msra.mxu0 %v678
  %1161 = vmatmul.f32.gmra.mxu0 %v1143
  %v1162 = vpop.f32.mrf.mxu0
  %v1163 = vadd.f32 0.0, %v1162
  %1164 = vdwg.mxu0
  %v1165 = vadd.f32 %v1139, %v1163
  %v1166 = vxor.u32 %v1165, 2147483648
  %v1167 = vmul.f32 %v1166, 1.442695
  %v1168 = vpow.pop %v1167
  %v1169 = vadd.f32 %v1168, 1.0
  %v1170 = vrcp.pop %v1169
  %v1171 = vmul.f32 %v1169, %v1170
  %v1172 = vsub.f32 1.0, %v1171
  %v1173 = vmul.f32 %v1170, %v1172
  %v1174 = vadd.f32 %v1170, %v1173
  %vm1175 = vweird.f32 %v1169
  %vm1176 = vweird.f32 %v1170
  %vm1177 = vmor %vm1175, %vm1176
  %v1178 = vsel %vm1177, %v1170, %v1174
  %v1179 = vand.u32 2147483647, %v1169
  %vm1180 = vcmp.eq.f32.partialorder %v1179, 8.507059e+37
  %v1181 = vand.u32 %v1169, 2147483648
  %v1182 = vor.u32 1.1754944e-38, %v1181
  %v1183 = vsel %vm1180, %v1182, %v1178
  %v1184 = vmul.f32 1.0, %v1183
  %v1185 = vtanh.pop %v1165
  %v1186 = vmul.f32 %v1184, %v1132
  %1188 = vrot.lane.b32.xlu0 %v1185, 64
  %v1189 = vpop.permute.xlu0 %1188
  %v1191 = vmul.f32 %v1184, %v1189
  %1193 = vrot.lane.b32.xlu0 %v1191, 32
  %v1194 = vpop.permute.xlu0 %1193
  %v1196 = vadd.f32 %v1186, %v1194
  %v1197 = vtanh.pop %v1196
  %1199 = vrot.lane.b32.xlu0 %v1197, 64
  %v1200 = vpop.permute.xlu0 %1199
  %v1202 = vmul.f32 %v1184, %v1200
  %v1203 = vld [vmem:[%s591] sm:$0xff]
  %1205 = vrot.lane.b32.xlu0 %v1202, 32
  %v1206 = vpop.permute.xlu0 %1205
  %v1207 = vsel %vm42, %v1206, 0
  %1209 = vmatpush.msra.mxu0 0.0
  %1210 = vmatpush.msra.mxu0 0.0
  %1211 = vmatpush.msra.mxu0 0.0
  %1212 = vmatpush.msra.mxu0 0.0
  %1213 = vmatpush.msra.mxu0 0.0
  %1214 = vmatpush.msra.mxu0 0.0
  %1215 = vmatpush.msra.mxu0 0.0
  %1216 = vmatpush.msra.mxu0 0.0
  %1217 = vmatpush.msra.mxu0 0.0
  %1218 = vmatpush.msra.mxu0 0.0
  %1219 = vmatpush.msra.mxu0 0.0
  %1220 = vmatpush.msra.mxu0 0.0
  %1221 = vmatpush.msra.mxu0 %v681
  %1222 = vmatpush.msra.mxu0 %v680
  %1223 = vmatpush.msra.mxu0 %v679
  %1224 = vmatpush.msra.mxu0 %v678
  %1225 = vmatmul.f32.gmra.mxu0 %v1207
  %v1226 = vpop.f32.mrf.mxu0
  %v1227 = vadd.f32 0.0, %v1226
  %1228 = vdwg.mxu0
  %v1229 = vadd.f32 %v1203, %v1227
  %v1230 = vxor.u32 %v1229, 2147483648
  %v1231 = vmul.f32 %v1230, 1.442695
  %v1232 = vpow.pop %v1231
  %v1233 = vadd.f32 %v1232, 1.0
  %v1234 = vrcp.pop %v1233
  %v1235 = vmul.f32 %v1233, %v1234
  %v1236 = vsub.f32 1.0, %v1235
  %v1237 = vmul.f32 %v1234, %v1236
  %v1238 = vadd.f32 %v1234, %v1237
  %vm1239 = vweird.f32 %v1233
  %vm1240 = vweird.f32 %v1234
  %vm1241 = vmor %vm1239, %vm1240
  %v1242 = vsel %vm1241, %v1234, %v1238
  %v1243 = vand.u32 2147483647, %v1233
  %vm1244 = vcmp.eq.f32.partialorder %v1243, 8.507059e+37
  %v1245 = vand.u32 %v1233, 2147483648
  %v1246 = vor.u32 1.1754944e-38, %v1245
  %v1247 = vsel %vm1244, %v1246, %v1242
  %v1248 = vmul.f32 1.0, %v1247
  %v1249 = vtanh.pop %v1229
  %v1250 = vmul.f32 %v1248, %v1196
  %1252 = vrot.lane.b32.xlu0 %v1249, 64
  %v1253 = vpop.permute.xlu0 %1252
  %v1255 = vmul.f32 %v1248, %v1253
  %1257 = vrot.lane.b32.xlu0 %v1255, 32
  %v1258 = vpop.permute.xlu0 %1257
  %v1260 = vadd.f32 %v1250, %v1258
  %v1261 = vtanh.pop %v1260
  %1263 = vrot.lane.b32.xlu0 %v1261, 64
  %v1264 = vpop.permute.xlu0 %1263
  %v1266 = vmul.f32 %v1248, %v1264
  %1268 = vrot.lane.b32.xlu0 %v1266, 32
  %v1269 = vpop.permute.xlu0 %1268
  %s1271 = scalar_lea.vmem %s5, 8
  %1272 = vst.msk [vmem:[%s1271] sm:$0xff] %vm42, %v1269
  %1274 = vrot.lane.b32.xlu0 %v1260, 96
  %v1275 = vpop.permute.xlu0 %1274
  %s1277 = scalar_lea.vmem %s6, 8
  %1278 = vst.msk [vmem:[%s1277] sm:$0xff] %vm42, %v1275
  // Predicated region
  $region22: #{encoder_forward.1} parent=0 // pred_check
    _
  $region23: #{encoder_forward.1} parent=0 // pred_check_branch
    %1280 = sbr.rel (0) target = $region25
  $region24: #{encoder_forward.1} parent=0 // pred_region
    _
  $region25: #{encoder_forward.1} parent=0 // pred_fallthru
    _
  // Predicated region
  $region26: #{encoder_forward.1} parent=0 // pred_check
    _
  $region27: #{encoder_forward.1} parent=0 // pred_check_branch
    %1282 = sbr.rel (0) target = $region29
  $region28: #{encoder_forward.1} parent=0 // pred_region
    _
  $region29: #{encoder_forward.1} parent=0 // pred_fallthru
    _
  // Predicated region
  $region30: #{encoder_forward.1} parent=0 // pred_check
    _
  $region31: #{encoder_forward.1} parent=0 // pred_check_branch
    %1284 = sbr.rel (0) target = $region33
  $region32: #{encoder_forward.1} parent=0 // pred_region
    _
  $region33: #{encoder_forward.1} parent=0 // pred_fallthru
    _
  // Predicated region
  $region34: #{encoder_forward.1} parent=0 // pred_check
    _
  $region35: #{encoder_forward.1} parent=0 // pred_check_branch
    %1286 = sbr.rel (0) target = $region37
  $region36: #{encoder_forward.1} parent=0 // pred_region
    _
  $region37: #{encoder_forward.1} parent=0 // pred_fallthru
    _

</llo_original>
